<compile_context>
chip_gen: v7x
topology: tpu7x:2x2x1
jax: 0.10.0
libtpu: 0.0.40
codegen_flags: <defaults>
</compile_context>

<pallas_src>
import functools

import jax
import jax.numpy as jnp
from jax.experimental import pallas as pl
from jax.experimental.pallas import tpu as pltpu

# --- synthetic model_config (FastSpeech-style, sized small but consistent) ---
ENCODER_DIM = 64    # model_config['encoder_dim']
FILTER_SIZE = 256   # model_config['duration_predictor_filter_size']
KERNEL = 3          # model_config['duration_predictor_kernel_size'] (padding=1 -> 'same')
NUM_BINS = 255
BIN_PAD = 256       # bins padded to a full 128-lane multiple (pad value = +inf)
LN_EPS = 1e-5
EMB_PAD = 128       # embedding feature dim padded to a full 128-lane tile


def _ln_relu(y, g, be):
    """Two-pass LayerNorm (reference-precision) + ReLU (Dropout = id in eval)."""
    mu = jnp.mean(y, axis=-1, keepdims=True)
    yc = y - mu
    var = jnp.mean(yc * yc, axis=-1, keepdims=True)
    return jnp.maximum(yc * jax.lax.rsqrt(var + LN_EPS) * g + be, 0.0)


def pitch_kernel(scal_ref,                          # SMEM (1,) f32: [alpha]
                 xl_ref, x_ref, xr_ref,             # (1,1,2,Cin), (1,TT,Cin), (1,1,2,Cin)
                 w1_ref, b1_ref, g1_ref, be1_ref,   # conv1 (3,Cin,Cf), bias/LN (1,Cf)
                 w2_ref, b2_ref, g2_ref, be2_ref,   # conv2 (3,Cf,Cf),  bias/LN (1,Cf)
                 wl_ref, bl_ref,                    # linear row (1,Cf), bias (1,1)
                 bins_ref,                          # (1, BIN_PAD) bins, +inf padded
                 emb_ref,                           # (FILTER_SIZE, EMB_PAD) padded table
                 emb_out_ref, pitch_out_ref,        # (1,TT,EMB_PAD) f32, (1,TT,1) int32
                 *, t_real):
    t = pl.program_id(1)
    xb = x_ref[0]                                   # (TT, Cin)
    TT = xb.shape[0]
    dot = lambda a, b: jnp.dot(a, b, preferred_element_type=jnp.float32)

    # x window with 2-frame halo: global frames [t*TT-2, t*TT+TT+2)
    xw = jnp.concatenate([xl_ref[0, 0], xb, xr_ref[0, 0]], axis=0)    # (TT+4, Cin)

    # --- conv1 over TT+2 rows (1-frame halo feeding conv2); 3 K=64 taps.
    h = (dot(xw[0:TT + 2], w1_ref[0])
         + dot(xw[1:TT + 3], w1_ref[1])
         + dot(xw[2:TT + 4], w1_ref[2])
         + b1_ref[...])
    h = _ln_relu(h, g1_ref[...], be1_ref[...])

    # Zero rows whose global frame lies outside [0, T): matches PyTorch's zero
    # padding of conv2 and kills garbage from the zero-padded sequence tail.
    gf = t * TT - 1 + jax.lax.broadcasted_iota(jnp.int32, (TT + 2, 1), 0)
    h = jnp.where((gf >= 0) & (gf < t_real), h, 0.0)

    # --- conv2: three K=256 taps (full contraction depth everywhere; no concat).
    y = (dot(h[0:TT], w2_ref[0])
         + dot(h[1:TT + 1], w2_ref[1])
         + dot(h[2:TT + 2], w2_ref[2])
         + b2_ref[...])
    y = _ln_relu(y, g2_ref[...], be2_ref[...])

    # --- final N=1 linear on the VPU (multiply + lane reduce), then ReLU.
    o = jnp.maximum(jnp.sum(y * wl_ref[...], axis=-1, keepdims=True)
                    + bl_ref[...], 0.0)             # (TT, 1)

    # --- (out + 0.5) * alpha, truncated toward zero (== .int() for any alpha).
    alpha = scal_ref[0]
    p = (o + 0.5) * alpha
    pitch_f = jnp.where(p >= 0.0, jnp.floor(p), jnp.ceil(p))          # integral f32
    pitch_out_ref[0] = pitch_f.astype(jnp.int32)                      # (TT, 1) column

    # --- exact torch.bucketize(right=False): idx = #{bins < v} (pad bins = +inf).
    idx = jnp.sum((bins_ref[...] < pitch_f).astype(jnp.int32),
                  axis=-1, keepdims=True)                             # (TT, 1)

    # --- embedding gather as one-hot @ padded table (MXU, unmasked lane-dense store).
    num_emb = emb_ref.shape[0]
    onehot = (jax.lax.broadcasted_iota(jnp.int32, (TT, num_emb), 1) == idx
              ).astype(jnp.float32)
    emb_out_ref[0] = dot(onehot, emb_ref[...])


def make_params(key):
    ks = jax.random.split(key, 6)
    f32 = jnp.float32
    # PyTorch Conv1d weight is (out, in, k); stored here pre-transposed as (k, in, out)
    w1 = jax.random.normal(ks[0], (KERNEL, ENCODER_DIM, FILTER_SIZE), f32) * 0.05
    b1 = jax.random.normal(ks[1], (1, FILTER_SIZE), f32) * 0.05
    g1 = jnp.ones((1, FILTER_SIZE), f32)
    be1 = jnp.zeros((1, FILTER_SIZE), f32)
    w2 = jax.random.normal(ks[2], (KERNEL, FILTER_SIZE, FILTER_SIZE), f32) * 0.05
    b2 = jax.random.normal(ks[3], (1, FILTER_SIZE), f32) * 0.05
    g2 = jnp.ones((1, FILTER_SIZE), f32)
    be2 = jnp.zeros((1, FILTER_SIZE), f32)
    wl = jax.random.normal(ks[4], (FILTER_SIZE, 1), f32) * 0.05
    bl = jnp.full((1, 1), 3.0, f32)   # shift predictions into the bin range
    emb = jax.random.normal(ks[5], (FILTER_SIZE, ENCODER_DIM), f32) * 0.02
    pitch_min, pitch_max = 0.0, 300.0
    bins = jnp.linspace(pitch_min - 0.001, pitch_max + 0.001, NUM_BINS,
                        dtype=f32).reshape(1, NUM_BINS)
    return (w1, b1, g1, be1, w2, b2, g2, be2, wl, bl, bins, emb)


def pitch_forward(x, params, alpha_p=1.0, tile_t=None):
    B, T, C = x.shape
    (w1, b1, g1, be1, w2, b2, g2, be2, wl, bl, bins, emb) = params

    if tile_t is None:
        tile_t = min(256, ((T + 7) // 8) * 8)     # multiple of 8, capped
    TT = max(8, (tile_t // 8) * 8)
    NT = -(-T // TT)
    T_pad = NT * TT

    # Zero-pad the sequence to T_pad plus a 2-frame halo on each side, then build
    # per-tile left/right 2-row halo inputs (conv1 needs +-2 frames so conv2's
    # 1-frame halo is exact). Zero frames outside [0,T) match Conv1d padding=1.
    x_pad = jnp.pad(x, ((0, 0), (2, (T_pad - T) + 2), (0, 0)))        # (B, T_pad+4, C)
    x_main = x_pad[:, 2:2 + T_pad]                                    # (B, T_pad, C)
    halo_l = x_pad[:, :T_pad].reshape(B, NT, TT, C)[:, :, :2, :]      # frames tTT-2, tTT-1
    halo_r = x_pad[:, 4:4 + T_pad].reshape(B, NT, TT, C)[:, :, TT - 2:, :]  # tTT+TT, +TT+1

    wl_row = wl.reshape(1, FILTER_SIZE)
    emb_p = jnp.pad(emb, ((0, 0), (0, EMB_PAD - ENCODER_DIM)))        # lane-dense table
    bins_p = jnp.pad(bins, ((0, 0), (0, BIN_PAD - NUM_BINS)),
                     constant_values=jnp.inf)
    scal = jnp.asarray([alpha_p], jnp.float32)

    full = lambda a: pl.BlockSpec(a.shape, lambda b, t, _nd=a.ndim: (0,) * _nd)
    kernel = functools.partial(pitch_kernel, t_real=T)

    emb_out, pitch_out = pl.pallas_call(
        kernel,
        grid=(B, NT),
        in_specs=[
            pl.BlockSpec(memory_space=pltpu.SMEM),                    # [alpha]
            pl.BlockSpec((1, 1, 2, C), lambda b, t: (b, t, 0, 0)),    # left halo
            pl.BlockSpec((1, TT, C), lambda b, t: (b, t, 0)),         # x tile
            pl.BlockSpec((1, 1, 2, C), lambda b, t: (b, t, 0, 0)),    # right halo
            full(w1), full(b1), full(g1), full(be1),
            full(w2), full(b2), full(g2), full(be2),
            full(wl_row), full(bl), full(bins_p), full(emb_p),
        ],
        out_specs=[
            pl.BlockSpec((1, TT, EMB_PAD), lambda b, t: (b, t, 0)),
            pl.BlockSpec((1, TT, 1), lambda b, t: (b, t, 0)),
        ],
        out_shape=[
            jax.ShapeDtypeStruct((B, T_pad, EMB_PAD), jnp.float32),
            jax.ShapeDtypeStruct((B, T_pad, 1), jnp.int32),
        ],
        compiler_params=pltpu.CompilerParams(
            dimension_semantics=("parallel", "parallel"),
            vmem_limit_bytes=48 * 1024 * 1024,
        ),
    )(scal, halo_l, x_main, halo_r, w1, b1, g1, be1, w2, b2, g2, be2,
      wl_row, bl, bins_p, emb_p)

    # eval-mode PyTorch semantics: out.squeeze().unsqueeze(0) -> (1, B, T)
    pitch_predictor_output = pitch_out[:, :T, 0][None]                # (1, B, T) int32
    pitch_embedding = emb_out[:, :T, :ENCODER_DIM][None]              # (1, B, T, ENCODER_DIM)
    return pitch_embedding, pitch_predictor_output


def ref_forward(x, params, alpha_p=1.0):
    """Pure-JAX reference matching the PyTorch module (eval mode, target=None)."""
    (w1, b1, g1, be1, w2, b2, g2, be2, wl, bl, bins, emb) = params

    def block(h, w, b, g, be):
        hp = jnp.pad(h, ((0, 0), (1, 1), (0, 0)))
        y = hp[:, :-2] @ w[0] + hp[:, 1:-1] @ w[1] + hp[:, 2:] @ w[2] + b
        mu = y.mean(-1, keepdims=True)
        var = ((y - mu) ** 2).mean(-1, keepdims=True)
        y = (y - mu) * jax.lax.rsqrt(var + LN_EPS) * g + be
        return jnp.maximum(y, 0.0)

    h = block(x, w1, b1, g1, be1)
    h = block(h, w2, b2, g2, be2)
    o = jnp.maximum(h @ wl + bl, 0.0)
    p = ((o + 0.5) * alpha_p).astype(jnp.int32)                       # (B,T,1)
    idx = jnp.searchsorted(bins[0], p[..., 0].astype(jnp.float32), side="left")
    return emb[idx][None], p[..., 0][None]


if __name__ == "__main__":
    key = jax.random.PRNGKey(0)
    kx, kp = jax.random.split(key)
    B, T = 2, 13                      # non-multiple-of-tile T exercises the halo + tail mask
    x = jax.random.normal(kx, (B, T, ENCODER_DIM), jnp.float32)
    params = make_params(kp)

    emb_ref, pitch_ref = ref_forward(x, params, alpha_p=1.0)

    # tiled path (2 tiles per batch row) and single-tile path
    for tile in (8, None):
        emb_out, pitch_out = pitch_forward(x, params, alpha_p=1.0, tile_t=tile)
        jax.block_until_ready((emb_out, pitch_out))
        assert emb_out.shape == (1, B, T, ENCODER_DIM) and pitch_out.shape == (1, B, T)
        assert pitch_out.dtype == jnp.int32
        assert jnp.array_equal(pitch_out, pitch_ref), f"pitch mismatch (tile={tile})"
        assert jnp.allclose(emb_out, emb_ref, atol=1e-4, rtol=1e-4), f"emb mismatch (tile={tile})"

    print("KERNEL_OK")
</pallas_src>

<mosaic_0001>
module attributes {stable_mosaic.version = 11 : i64} {
  func.func @pitch_kernel(%arg0: i32, %arg1: i32, %arg2: memref<1xf32, #tpu.memory_space<smem>>, %arg3: memref<1x1x2x64xf32, #tpu.memory_space<vmem>>, %arg4: memref<1x8x64xf32, #tpu.memory_space<vmem>>, %arg5: memref<1x1x2x64xf32, #tpu.memory_space<vmem>>, %arg6: memref<3x64x256xf32, #tpu.memory_space<vmem>>, %arg7: memref<1x256xf32, #tpu.memory_space<vmem>>, %arg8: memref<1x256xf32, #tpu.memory_space<vmem>>, %arg9: memref<1x256xf32, #tpu.memory_space<vmem>>, %arg10: memref<3x256x256xf32, #tpu.memory_space<vmem>>, %arg11: memref<1x256xf32, #tpu.memory_space<vmem>>, %arg12: memref<1x256xf32, #tpu.memory_space<vmem>>, %arg13: memref<1x256xf32, #tpu.memory_space<vmem>>, %arg14: memref<1x256xf32, #tpu.memory_space<vmem>>, %arg15: memref<1x1xf32, #tpu.memory_space<vmem>>, %arg16: memref<1x256xf32, #tpu.memory_space<vmem>>, %arg17: memref<256x128xf32, #tpu.memory_space<vmem>>, %arg18: memref<1x8x128xf32, #tpu.memory_space<vmem>>, %arg19: memref<1x8x1xi32, #tpu.memory_space<vmem>>) attributes {dimension_semantics = [#tpu.dimension_semantics<parallel>, #tpu.dimension_semantics<parallel>], iteration_bounds = array<i64: 2, 2>, scalar_prefetch = 0 : i64, scratch_operands = 0 : i64, tpu.core_type = #tpu.core_type<tc>, window_params = [{transform_indices = @transform_0, window_bounds = array<i64: 1>}, {transform_indices = @transform_1, window_bounds = array<i64: 1, 1, 2, 64>}, {transform_indices = @transform_2, window_bounds = array<i64: 1, 8, 64>}, {transform_indices = @transform_3, window_bounds = array<i64: 1, 1, 2, 64>}, {pipeline_mode = #tpu.pipeline_mode<synchronous>, transform_indices = @transform_4, window_bounds = array<i64: 3, 64, 256>}, {pipeline_mode = #tpu.pipeline_mode<synchronous>, transform_indices = @transform_5, window_bounds = array<i64: 1, 256>}, {pipeline_mode = #tpu.pipeline_mode<synchronous>, transform_indices = @transform_6, window_bounds = array<i64: 1, 256>}, {pipeline_mode = #tpu.pipeline_mode<synchronous>, transform_indices = @transform_7, window_bounds = array<i64: 1, 256>}, {pipeline_mode = #tpu.pipeline_mode<synchronous>, transform_indices = @transform_8, window_bounds = array<i64: 3, 256, 256>}, {pipeline_mode = #tpu.pipeline_mode<synchronous>, transform_indices = @transform_9, window_bounds = array<i64: 1, 256>}, {pipeline_mode = #tpu.pipeline_mode<synchronous>, transform_indices = @transform_10, window_bounds = array<i64: 1, 256>}, {pipeline_mode = #tpu.pipeline_mode<synchronous>, transform_indices = @transform_11, window_bounds = array<i64: 1, 256>}, {pipeline_mode = #tpu.pipeline_mode<synchronous>, transform_indices = @transform_12, window_bounds = array<i64: 1, 256>}, {pipeline_mode = #tpu.pipeline_mode<synchronous>, transform_indices = @transform_13, window_bounds = array<i64: 1, 1>}, {pipeline_mode = #tpu.pipeline_mode<synchronous>, transform_indices = @transform_14, window_bounds = array<i64: 1, 256>}, {pipeline_mode = #tpu.pipeline_mode<synchronous>, transform_indices = @transform_15, window_bounds = array<i64: 256, 128>}, {transform_indices = @transform_16, window_bounds = array<i64: 1, 8, 128>}, {transform_indices = @transform_17, window_bounds = array<i64: 1, 8, 1>}]} {
    %c0 = arith.constant 0 : index
    %c0_0 = arith.constant 0 : index
    %c0_1 = arith.constant 0 : index
    %0 = vector.load %arg4[%c0, %c0_0, %c0_1] : memref<1x8x64xf32, #tpu.memory_space<vmem>>, vector<1x8x64xf32>
    %1 = vector.shape_cast %0 : vector<1x8x64xf32> to vector<8x64xf32>
    %c0_2 = arith.constant 0 : index
    %c0_3 = arith.constant 0 : index
    %c0_4 = arith.constant 0 : index
    %c0_5 = arith.constant 0 : index
    %2 = vector.load %arg3[%c0_2, %c0_3, %c0_4, %c0_5] : memref<1x1x2x64xf32, #tpu.memory_space<vmem>>, vector<1x1x2x64xf32>
    %3 = vector.shape_cast %2 : vector<1x1x2x64xf32> to vector<2x64xf32>
    %c0_6 = arith.constant 0 : index
    %c0_7 = arith.constant 0 : index
    %c0_8 = arith.constant 0 : index
    %c0_9 = arith.constant 0 : index
    %4 = vector.load %arg5[%c0_6, %c0_7, %c0_8, %c0_9] : memref<1x1x2x64xf32, #tpu.memory_space<vmem>>, vector<1x1x2x64xf32>
    %5 = vector.shape_cast %4 : vector<1x1x2x64xf32> to vector<2x64xf32>
    %6 = tpu.concatenate %3, %1, %5 in 0 : vector<2x64xf32>, vector<8x64xf32>, vector<2x64xf32> -> vector<12x64xf32>
    %7 = vector.extract_strided_slice %6 {offsets = [0, 0], sizes = [10, 64], strides = [1, 1]} : vector<12x64xf32> to vector<10x64xf32>
    %c0_10 = arith.constant 0 : index
    %c0_11 = arith.constant 0 : index
    %c0_12 = arith.constant 0 : index
    %8 = vector.load %arg6[%c0_10, %c0_11, %c0_12] : memref<3x64x256xf32, #tpu.memory_space<vmem>>, vector<1x64x256xf32>
    %9 = vector.shape_cast %8 : vector<1x64x256xf32> to vector<64x256xf32>
    %cst = arith.constant dense<0.000000e+00> : vector<10x256xf32>
    %10 = tpu.matmul %7, %9, %cst {dimension_numbers = #tpu.dot_dimension_numbers<[1], [0], [0], [1], [0, 0, 1, 1], [], []>} : vector<10x64xf32>, vector<64x256xf32>, vector<10x256xf32> -> vector<10x256xf32>
    %11 = vector.extract_strided_slice %6 {offsets = [1, 0], sizes = [10, 64], strides = [1, 1]} : vector<12x64xf32> to vector<10x64xf32>
    %c1 = arith.constant 1 : index
    %c0_13 = arith.constant 0 : index
    %c0_14 = arith.constant 0 : index
    %12 = vector.load %arg6[%c1, %c0_13, %c0_14] : memref<3x64x256xf32, #tpu.memory_space<vmem>>, vector<1x64x256xf32>
    %13 = vector.shape_cast %12 : vector<1x64x256xf32> to vector<64x256xf32>
    %cst_15 = arith.constant dense<0.000000e+00> : vector<10x256xf32>
    %14 = tpu.matmul %11, %13, %cst_15 {dimension_numbers = #tpu.dot_dimension_numbers<[1], [0], [0], [1], [0, 0, 1, 1], [], []>} : vector<10x64xf32>, vector<64x256xf32>, vector<10x256xf32> -> vector<10x256xf32>
    %15 = arith.addf %10, %14 : vector<10x256xf32>
    %16 = vector.extract_strided_slice %6 {offsets = [2, 0], sizes = [10, 64], strides = [1, 1]} : vector<12x64xf32> to vector<10x64xf32>
    %c2 = arith.constant 2 : index
    %c0_16 = arith.constant 0 : index
    %c0_17 = arith.constant 0 : index
    %17 = vector.load %arg6[%c2, %c0_16, %c0_17] : memref<3x64x256xf32, #tpu.memory_space<vmem>>, vector<1x64x256xf32>
    %18 = vector.shape_cast %17 : vector<1x64x256xf32> to vector<64x256xf32>
    %cst_18 = arith.constant dense<0.000000e+00> : vector<10x256xf32>
    %19 = tpu.matmul %16, %18, %cst_18 {dimension_numbers = #tpu.dot_dimension_numbers<[1], [0], [0], [1], [0, 0, 1, 1], [], []>} : vector<10x64xf32>, vector<64x256xf32>, vector<10x256xf32> -> vector<10x256xf32>
    %20 = arith.addf %15, %19 : vector<10x256xf32>
    %c0_19 = arith.constant 0 : index
    %c0_20 = arith.constant 0 : index
    %21 = vector.load %arg7[%c0_19, %c0_20] : memref<1x256xf32, #tpu.memory_space<vmem>>, vector<1x256xf32>
    %22 = vector.broadcast %21 : vector<1x256xf32> to vector<10x256xf32>
    %23 = arith.addf %20, %22 : vector<10x256xf32>
    %c0_21 = arith.constant 0 : index
    %c0_22 = arith.constant 0 : index
    %24 = vector.load %arg8[%c0_21, %c0_22] : memref<1x256xf32, #tpu.memory_space<vmem>>, vector<1x256xf32>
    %c0_23 = arith.constant 0 : index
    %c0_24 = arith.constant 0 : index
    %25 = vector.load %arg9[%c0_23, %c0_24] : memref<1x256xf32, #tpu.memory_space<vmem>>, vector<1x256xf32>
    %cst_25 = arith.constant dense<0.000000e+00> : vector<10xf32>
    %26 = vector.multi_reduction <add>, %23, %cst_25 [1] : vector<10x256xf32> to vector<10xf32>
    %27 = vector.shape_cast %26 : vector<10xf32> to vector<10x1xf32>
    %cst_26 = arith.constant 2.560000e+02 : f32
    %28 = vector.broadcast %cst_26 : f32 to vector<10x1xf32>
    %29 = arith.divf %27, %28 : vector<10x1xf32>
    %30 = vector.broadcast %29 : vector<10x1xf32> to vector<10x256xf32>
    %31 = arith.subf %23, %30 : vector<10x256xf32>
    %32 = arith.mulf %31, %31 : vector<10x256xf32>
    %cst_27 = arith.constant dense<0.000000e+00> : vector<10xf32>
    %33 = vector.multi_reduction <add>, %32, %cst_27 [1] : vector<10x256xf32> to vector<10xf32>
    %34 = vector.shape_cast %33 : vector<10xf32> to vector<10x1xf32>
    %cst_28 = arith.constant 2.560000e+02 : f32
    %35 = vector.broadcast %cst_28 : f32 to vector<10x1xf32>
    %36 = arith.divf %34, %35 : vector<10x1xf32>
    %cst_29 = arith.constant 9.99999974E-6 : f32
    %37 = vector.broadcast %cst_29 : f32 to vector<10x1xf32>
    %38 = arith.addf %36, %37 : vector<10x1xf32>
    %39 = math.rsqrt %38 : vector<10x1xf32>
    %40 = vector.broadcast %39 : vector<10x1xf32> to vector<10x256xf32>
    %41 = arith.mulf %31, %40 : vector<10x256xf32>
    %42 = vector.broadcast %24 : vector<1x256xf32> to vector<10x256xf32>
    %43 = arith.mulf %41, %42 : vector<10x256xf32>
    %44 = vector.broadcast %25 : vector<1x256xf32> to vector<10x256xf32>
    %45 = arith.addf %43, %44 : vector<10x256xf32>
    %cst_30 = arith.constant 0.000000e+00 : f32
    %46 = vector.broadcast %cst_30 : f32 to vector<10x256xf32>
    %47 = arith.maximumf %45, %46 : vector<10x256xf32>
    %c8_i32 = arith.constant 8 : i32
    %48 = arith.muli %arg1, %c8_i32 : i32
    %c1_i32 = arith.constant 1 : i32
    %49 = arith.subi %48, %c1_i32 : i32
    %50 = tpu.iota {dimensions = array<i32: 0>} : vector<10x1xi32>
    %51 = vector.broadcast %49 : i32 to vector<10x1xi32>
    %52 = arith.addi %51, %50 : vector<10x1xi32>
    %c0_i32 = arith.constant 0 : i32
    %53 = vector.broadcast %c0_i32 : i32 to vector<10x1xi32>
    %54 = arith.cmpi sge, %52, %53 : vector<10x1xi32>
    %c13_i32 = arith.constant 13 : i32
    %55 = vector.broadcast %c13_i32 : i32 to vector<10x1xi32>
    %56 = arith.cmpi slt, %52, %55 : vector<10x1xi32>
    %57 = arith.andi %54, %56 : vector<10x1xi1>
    %cst_31 = arith.constant 0.000000e+00 : f32
    %58 = vector.shape_cast %57 : vector<10x1xi1> to vector<10x1xi1>
    %59 = vector.broadcast %58 : vector<10x1xi1> to vector<10x256xi1>
    %60 = vector.broadcast %cst_31 : f32 to vector<10x256xf32>
    %61 = arith.select %59, %47, %60 : vector<10x256xi1>, vector<10x256xf32>
    %62 = vector.extract_strided_slice %61 {offsets = [0, 0], sizes = [8, 256], strides = [1, 1]} : vector<10x256xf32> to vector<8x256xf32>
    %c0_32 = arith.constant 0 : index
    %c0_33 = arith.constant 0 : index
    %c0_34 = arith.constant 0 : index
    %63 = vector.load %arg10[%c0_32, %c0_33, %c0_34] : memref<3x256x256xf32, #tpu.memory_space<vmem>>, vector<1x256x256xf32>
    %64 = vector.shape_cast %63 : vector<1x256x256xf32> to vector<256x256xf32>
    %cst_35 = arith.constant dense<0.000000e+00> : vector<8x256xf32>
    %65 = tpu.matmul %62, %64, %cst_35 {dimension_numbers = #tpu.dot_dimension_numbers<[1], [0], [0], [1], [0, 0, 1, 1], [], []>} : vector<8x256xf32>, vector<256x256xf32>, vector<8x256xf32> -> vector<8x256xf32>
    %66 = vector.extract_strided_slice %61 {offsets = [1, 0], sizes = [8, 256], strides = [1, 1]} : vector<10x256xf32> to vector<8x256xf32>
    %c1_36 = arith.constant 1 : index
    %c0_37 = arith.constant 0 : index
    %c0_38 = arith.constant 0 : index
    %67 = vector.load %arg10[%c1_36, %c0_37, %c0_38] : memref<3x256x256xf32, #tpu.memory_space<vmem>>, vector<1x256x256xf32>
    %68 = vector.shape_cast %67 : vector<1x256x256xf32> to vector<256x256xf32>
    %cst_39 = arith.constant dense<0.000000e+00> : vector<8x256xf32>
    %69 = tpu.matmul %66, %68, %cst_39 {dimension_numbers = #tpu.dot_dimension_numbers<[1], [0], [0], [1], [0, 0, 1, 1], [], []>} : vector<8x256xf32>, vector<256x256xf32>, vector<8x256xf32> -> vector<8x256xf32>
    %70 = arith.addf %65, %69 : vector<8x256xf32>
    %71 = vector.extract_strided_slice %61 {offsets = [2, 0], sizes = [8, 256], strides = [1, 1]} : vector<10x256xf32> to vector<8x256xf32>
    %c2_40 = arith.constant 2 : index
    %c0_41 = arith.constant 0 : index
    %c0_42 = arith.constant 0 : index
    %72 = vector.load %arg10[%c2_40, %c0_41, %c0_42] : memref<3x256x256xf32, #tpu.memory_space<vmem>>, vector<1x256x256xf32>
    %73 = vector.shape_cast %72 : vector<1x256x256xf32> to vector<256x256xf32>
    %cst_43 = arith.constant dense<0.000000e+00> : vector<8x256xf32>
    %74 = tpu.matmul %71, %73, %cst_43 {dimension_numbers = #tpu.dot_dimension_numbers<[1], [0], [0], [1], [0, 0, 1, 1], [], []>} : vector<8x256xf32>, vector<256x256xf32>, vector<8x256xf32> -> vector<8x256xf32>
    %75 = arith.addf %70, %74 : vector<8x256xf32>
    %c0_44 = arith.constant 0 : index
    %c0_45 = arith.constant 0 : index
    %76 = vector.load %arg11[%c0_44, %c0_45] : memref<1x256xf32, #tpu.memory_space<vmem>>, vector<1x256xf32>
    %77 = vector.broadcast %76 : vector<1x256xf32> to vector<8x256xf32>
    %78 = arith.addf %75, %77 : vector<8x256xf32>
    %c0_46 = arith.constant 0 : index
    %c0_47 = arith.constant 0 : index
    %79 = vector.load %arg12[%c0_46, %c0_47] : memref<1x256xf32, #tpu.memory_space<vmem>>, vector<1x256xf32>
    %c0_48 = arith.constant 0 : index
    %c0_49 = arith.constant 0 : index
    %80 = vector.load %arg13[%c0_48, %c0_49] : memref<1x256xf32, #tpu.memory_space<vmem>>, vector<1x256xf32>
    %cst_50 = arith.constant dense<0.000000e+00> : vector<8xf32>
    %81 = vector.multi_reduction <add>, %78, %cst_50 [1] : vector<8x256xf32> to vector<8xf32>
    %82 = vector.shape_cast %81 : vector<8xf32> to vector<8x1xf32>
    %cst_51 = arith.constant 2.560000e+02 : f32
    %83 = vector.broadcast %cst_51 : f32 to vector<8x1xf32>
    %84 = arith.divf %82, %83 : vector<8x1xf32>
    %85 = vector.broadcast %84 : vector<8x1xf32> to vector<8x256xf32>
    %86 = arith.subf %78, %85 : vector<8x256xf32>
    %87 = arith.mulf %86, %86 : vector<8x256xf32>
    %cst_52 = arith.constant dense<0.000000e+00> : vector<8xf32>
    %88 = vector.multi_reduction <add>, %87, %cst_52 [1] : vector<8x256xf32> to vector<8xf32>
    %89 = vector.shape_cast %88 : vector<8xf32> to vector<8x1xf32>
    %cst_53 = arith.constant 2.560000e+02 : f32
    %90 = vector.broadcast %cst_53 : f32 to vector<8x1xf32>
    %91 = arith.divf %89, %90 : vector<8x1xf32>
    %cst_54 = arith.constant 9.99999974E-6 : f32
    %92 = vector.broadcast %cst_54 : f32 to vector<8x1xf32>
    %93 = arith.addf %91, %92 : vector<8x1xf32>
    %94 = math.rsqrt %93 : vector<8x1xf32>
    %95 = vector.broadcast %94 : vector<8x1xf32> to vector<8x256xf32>
    %96 = arith.mulf %86, %95 : vector<8x256xf32>
    %97 = vector.broadcast %79 : vector<1x256xf32> to vector<8x256xf32>
    %98 = arith.mulf %96, %97 : vector<8x256xf32>
    %99 = vector.broadcast %80 : vector<1x256xf32> to vector<8x256xf32>
    %100 = arith.addf %98, %99 : vector<8x256xf32>
    %cst_55 = arith.constant 0.000000e+00 : f32
    %101 = vector.broadcast %cst_55 : f32 to vector<8x256xf32>
    %102 = arith.maximumf %100, %101 : vector<8x256xf32>
    %c0_56 = arith.constant 0 : index
    %c0_57 = arith.constant 0 : index
    %103 = vector.load %arg14[%c0_56, %c0_57] : memref<1x256xf32, #tpu.memory_space<vmem>>, vector<1x256xf32>
    %104 = vector.broadcast %103 : vector<1x256xf32> to vector<8x256xf32>
    %105 = arith.mulf %102, %104 : vector<8x256xf32>
    %cst_58 = arith.constant dense<0.000000e+00> : vector<8xf32>
    %106 = vector.multi_reduction <add>, %105, %cst_58 [1] : vector<8x256xf32> to vector<8xf32>
    %107 = vector.shape_cast %106 : vector<8xf32> to vector<8x1xf32>
    %c0_59 = arith.constant 0 : index
    %c0_60 = arith.constant 0 : index
    %108 = vector.load %arg15[%c0_59, %c0_60] : memref<1x1xf32, #tpu.memory_space<vmem>>, vector<1x1xf32>
    %109 = vector.broadcast %108 : vector<1x1xf32> to vector<8x1xf32>
    %110 = arith.addf %107, %109 : vector<8x1xf32>
    %cst_61 = arith.constant 0.000000e+00 : f32
    %111 = vector.broadcast %cst_61 : f32 to vector<8x1xf32>
    %112 = arith.maximumf %110, %111 : vector<8x1xf32>
    %c0_62 = arith.constant 0 : index
    %113 = memref.load %arg2[%c0_62] : memref<1xf32, #tpu.memory_space<smem>>
    %cst_63 = arith.constant 5.000000e-01 : f32
    %114 = vector.broadcast %cst_63 : f32 to vector<8x1xf32>
    %115 = arith.addf %112, %114 : vector<8x1xf32>
    %116 = vector.broadcast %113 : f32 to vector<8x1xf32>
    %117 = arith.mulf %115, %116 : vector<8x1xf32>
    %cst_64 = arith.constant 0.000000e+00 : f32
    %118 = vector.broadcast %cst_64 : f32 to vector<8x1xf32>
    %119 = arith.cmpf oge, %117, %118 : vector<8x1xf32>
    %120 = math.floor %117 : vector<8x1xf32>
    %121 = math.ceil %117 : vector<8x1xf32>
    %122 = arith.select %119, %120, %121 : vector<8x1xi1>, vector<8x1xf32>
    %123 = arith.fptosi %122 : vector<8x1xf32> to vector<8x1xi32>
    %c0_65 = arith.constant 0 : index
    %c0_66 = arith.constant 0 : index
    %c0_67 = arith.constant 0 : index
    %124 = vector.load %arg19[%c0_65, %c0_66, %c0_67] : memref<1x8x1xi32, #tpu.memory_space<vmem>>, vector<1x8x1xi32>
    %125 = vector.shape_cast %124 : vector<1x8x1xi32> to vector<8x1xi32>
    %126 = vector.shape_cast %123 : vector<8x1xi32> to vector<1x8x1xi32>
    tpu.vector_store %arg19[%c0_65, %c0_66, %c0_67], %126 {strides = array<i32>} : memref<1x8x1xi32, #tpu.memory_space<vmem>>, vector<1x8x1xi32>,
    %c0_68 = arith.constant 0 : index
    %c0_69 = arith.constant 0 : index
    %127 = vector.load %arg16[%c0_68, %c0_69] : memref<1x256xf32, #tpu.memory_space<vmem>>, vector<1x256xf32>
    %128 = vector.broadcast %127 : vector<1x256xf32> to vector<8x256xf32>
    %129 = vector.broadcast %122 : vector<8x1xf32> to vector<8x256xf32>
    %130 = arith.cmpf olt, %128, %129 : vector<8x256xf32>
    %131 = arith.extui %130 : vector<8x256xi1> to vector<8x256xi32>
    %cst_70 = arith.constant dense<0> : vector<8xi32>
    %132 = vector.multi_reduction <add>, %131, %cst_70 [1] : vector<8x256xi32> to vector<8xi32>
    %133 = vector.shape_cast %132 : vector<8xi32> to vector<8x1xi32>
    %134 = tpu.iota {dimensions = array<i32: 1>} : vector<8x256xi32>
    %135 = vector.broadcast %133 : vector<8x1xi32> to vector<8x256xi32>
    %136 = arith.cmpi eq, %134, %135 : vector<8x256xi32>
    %137 = arith.extui %136 : vector<8x256xi1> to vector<8x256xi32>
    %138 = arith.sitofp %137 : vector<8x256xi32> to vector<8x256xf32>
    %c0_71 = arith.constant 0 : index
    %c0_72 = arith.constant 0 : index
    %139 = vector.load %arg17[%c0_71, %c0_72] : memref<256x128xf32, #tpu.memory_space<vmem>>, vector<256x128xf32>
    %cst_73 = arith.constant dense<0.000000e+00> : vector<8x128xf32>
    %140 = tpu.matmul %138, %139, %cst_73 {dimension_numbers = #tpu.dot_dimension_numbers<[1], [0], [0], [1], [0, 0, 1, 1], [], []>} : vector<8x256xf32>, vector<256x128xf32>, vector<8x128xf32> -> vector<8x128xf32>
    %c0_74 = arith.constant 0 : index
    %c0_75 = arith.constant 0 : index
    %c0_76 = arith.constant 0 : index
    %141 = vector.load %arg18[%c0_74, %c0_75, %c0_76] : memref<1x8x128xf32, #tpu.memory_space<vmem>>, vector<1x8x128xf32>
    %142 = vector.shape_cast %141 : vector<1x8x128xf32> to vector<8x128xf32>
    %143 = vector.shape_cast %140 : vector<8x128xf32> to vector<1x8x128xf32>
    tpu.vector_store %arg18[%c0_74, %c0_75, %c0_76], %143 {strides = array<i32>} : memref<1x8x128xf32, #tpu.memory_space<vmem>>, vector<1x8x128xf32>,
    return
  }
  func.func @transform_0(%arg0: i32, %arg1: i32) -> i32 {
    %c0_i32 = arith.constant 0 : i32
    %c0_i32_0 = arith.constant 0 : i32
    return %c0_i32 : i32
  }
  func.func @transform_1(%arg0: i32, %arg1: i32) -> (i32, i32, i32, i32) {
    %c0_i32 = arith.constant 0 : i32
    %c0_i32_0 = arith.constant 0 : i32
    %c0_i32_1 = arith.constant 0 : i32
    return %arg0, %arg1, %c0_i32, %c0_i32_0 : i32, i32, i32, i32
  }
  func.func @transform_2(%arg0: i32, %arg1: i32) -> (i32, i32, i32) {
    %c0_i32 = arith.constant 0 : i32
    %c0_i32_0 = arith.constant 0 : i32
    return %arg0, %arg1, %c0_i32 : i32, i32, i32
  }
  func.func @transform_3(%arg0: i32, %arg1: i32) -> (i32, i32, i32, i32) {
    %c0_i32 = arith.constant 0 : i32
    %c0_i32_0 = arith.constant 0 : i32
    %c0_i32_1 = arith.constant 0 : i32
    return %arg0, %arg1, %c0_i32, %c0_i32_0 : i32, i32, i32, i32
  }
  func.func @transform_4(%arg0: i32, %arg1: i32) -> (i32, i32, i32) {
    %c0_i32 = arith.constant 0 : i32
    %c0_i32_0 = arith.constant 0 : i32
    %c0_i32_1 = arith.constant 0 : i32
    %c0_i32_2 = arith.constant 0 : i32
    return %c0_i32, %c0_i32_0, %c0_i32_1 : i32, i32, i32
  }
  func.func @transform_5(%arg0: i32, %arg1: i32) -> (i32, i32) {
    %c0_i32 = arith.constant 0 : i32
    %c0_i32_0 = arith.constant 0 : i32
    %c0_i32_1 = arith.constant 0 : i32
    return %c0_i32, %c0_i32_0 : i32, i32
  }
  func.func @transform_6(%arg0: i32, %arg1: i32) -> (i32, i32) {
    %c0_i32 = arith.constant 0 : i32
    %c0_i32_0 = arith.constant 0 : i32
    %c0_i32_1 = arith.constant 0 : i32
    return %c0_i32, %c0_i32_0 : i32, i32
  }
  func.func @transform_7(%arg0: i32, %arg1: i32) -> (i32, i32) {
    %c0_i32 = arith.constant 0 : i32
    %c0_i32_0 = arith.constant 0 : i32
    %c0_i32_1 = arith.constant 0 : i32
    return %c0_i32, %c0_i32_0 : i32, i32
  }
  func.func @transform_8(%arg0: i32, %arg1: i32) -> (i32, i32, i32) {
    %c0_i32 = arith.constant 0 : i32
    %c0_i32_0 = arith.constant 0 : i32
    %c0_i32_1 = arith.constant 0 : i32
    %c0_i32_2 = arith.constant 0 : i32
    return %c0_i32, %c0_i32_0, %c0_i32_1 : i32, i32, i32
  }
  func.func @transform_9(%arg0: i32, %arg1: i32) -> (i32, i32) {
    %c0_i32 = arith.constant 0 : i32
    %c0_i32_0 = arith.constant 0 : i32
    %c0_i32_1 = arith.constant 0 : i32
    return %c0_i32, %c0_i32_0 : i32, i32
  }
  func.func @transform_10(%arg0: i32, %arg1: i32) -> (i32, i32) {
    %c0_i32 = arith.constant 0 : i32
    %c0_i32_0 = arith.constant 0 : i32
    %c0_i32_1 = arith.constant 0 : i32
    return %c0_i32, %c0_i32_0 : i32, i32
  }
  func.func @transform_11(%arg0: i32, %arg1: i32) -> (i32, i32) {
    %c0_i32 = arith.constant 0 : i32
    %c0_i32_0 = arith.constant 0 : i32
    %c0_i32_1 = arith.constant 0 : i32
    return %c0_i32, %c0_i32_0 : i32, i32
  }
  func.func @transform_12(%arg0: i32, %arg1: i32) -> (i32, i32) {
    %c0_i32 = arith.constant 0 : i32
    %c0_i32_0 = arith.constant 0 : i32
    %c0_i32_1 = arith.constant 0 : i32
    return %c0_i32, %c0_i32_0 : i32, i32
  }
  func.func @transform_13(%arg0: i32, %arg1: i32) -> (i32, i32) {
    %c0_i32 = arith.constant 0 : i32
    %c0_i32_0 = arith.constant 0 : i32
    %c0_i32_1 = arith.constant 0 : i32
    return %c0_i32, %c0_i32_0 : i32, i32
  }
  func.func @transform_14(%arg0: i32, %arg1: i32) -> (i32, i32) {
    %c0_i32 = arith.constant 0 : i32
    %c0_i32_0 = arith.constant 0 : i32
    %c0_i32_1 = arith.constant 0 : i32
    return %c0_i32, %c0_i32_0 : i32, i32
  }
  func.func @transform_15(%arg0: i32, %arg1: i32) -> (i32, i32) {
    %c0_i32 = arith.constant 0 : i32
    %c0_i32_0 = arith.constant 0 : i32
    %c0_i32_1 = arith.constant 0 : i32
    return %c0_i32, %c0_i32_0 : i32, i32
  }
  func.func @transform_16(%arg0: i32, %arg1: i32) -> (i32, i32, i32) {
    %c0_i32 = arith.constant 0 : i32
    %c0_i32_0 = arith.constant 0 : i32
    return %arg0, %arg1, %c0_i32 : i32, i32, i32
  }
  func.func @transform_17(%arg0: i32, %arg1: i32) -> (i32, i32, i32) {
    %c0_i32 = arith.constant 0 : i32
    %c0_i32_0 = arith.constant 0 : i32
    return %arg0, %arg1, %c0_i32 : i32, i32, i32
  }
}

</mosaic_0001>

<llo_original>
// kernel: tpu_custom_call.1
$region0: #{tpu_custom_call.1}
  #allocation0 [shape = 'u32[]', space=smem, size = 0x4, offset = 0x4, fixed_abs, tag = 'smem constant byte address 0x4 - core index']
  #allocation1 [shape = 'u32[144,128]{1,0:T(1,128)}', space=vmem, size = 0x12000, scoped, tag = 'internal scratch']
  #allocation2 [shape = 'f32[1]{0:T(128)S(6)}', space=smem, size = 0x200, scoped, tag = 'scoped memory for tpu_custom_call.1']
  #allocation3 [shape = 'f32[1,1]{1,0:T(1,128)S(1)}', space=vmem, size = 0x200, scoped, tag = 'scoped memory for tpu_custom_call.1']
  %s0 = inlined_call_operand.<no memory space> [shape: f32[1], index: 0, kind: input, shape index: {}]
  %s1 = inlined_call_operand.hbm [shape: f32[2,2,2,64], index: 1, kind: input, shape index: {}]
  %s2 = inlined_call_operand.hbm [shape: f32[2,16,64], index: 2, kind: input, shape index: {}]
  %s3 = inlined_call_operand.vmem [shape: f32[2,2,2,64], index: 3, kind: input, shape index: {}]
  %s4 = inlined_call_operand.hbm [shape: f32[3,64,256], index: 4, kind: input, shape index: {}]
  %s5 = inlined_call_operand.vmem [shape: f32[1,256], index: 5, kind: input, shape index: {}]
  %s6 = inlined_call_operand.vmem [shape: f32[1,256], index: 6, kind: input, shape index: {}]
  %s7 = inlined_call_operand.vmem [shape: f32[1,256], index: 7, kind: input, shape index: {}]
  %s8 = inlined_call_operand.hbm [shape: f32[3,256,256], index: 8, kind: input, shape index: {}]
  %s9 = inlined_call_operand.vmem [shape: f32[1,256], index: 9, kind: input, shape index: {}]
  %s10 = inlined_call_operand.vmem [shape: f32[1,256], index: 10, kind: input, shape index: {}]
  %s11 = inlined_call_operand.vmem [shape: f32[1,256], index: 11, kind: input, shape index: {}]
  %s12 = inlined_call_operand.vmem [shape: f32[1,256], index: 12, kind: input, shape index: {}]
  %s13 = inlined_call_operand.<no memory space> [shape: f32[1,1], index: 13, kind: input, shape index: {}]
  %s14 = inlined_call_operand.vmem [shape: f32[1,256], index: 14, kind: input, shape index: {}]
  %s15 = inlined_call_operand.hbm [shape: f32[256,128], index: 15, kind: input, shape index: {}]
  %s16 = inlined_call_operand.hbm [shape: f32[2,16,128], index: 16, kind: output, shape index: {0}]
  %s17 = inlined_call_operand.vmem [shape: s32[2,16,1], index: 17, kind: output, shape index: {1}]
  %18 = xla_tuple %s16, %s17
  %s19 = sld [smem:[#allocation0]]
  $region125: #{tpu_custom_call.1} parent=0
    _
  %s21 = ssub.s32 1, %s19
  %s22 = scalar_select 0, %s21, %s19
  %23 = sst [smem:[#allocation2]] %s0
  %v24 = vstv %s13
  %25 = vst [vmem:[#allocation3] sm:$0x1] %v24
  $region1: #{tpu_custom_call.1} parent=0
    #allocation4 [shape = 'u8[2048]{0}', space=vmem, size = 0x800, scoped, tag = 'input window, operand 1']
    #allocation5 [shape = 's32[2]{0}', space=sflag, size = 0x8, scoped, tag = 'scoped memory for tpu_custom_call.1']
    #allocation6 [shape = 's32[2]{0}', space=sflag, size = 0x8, scoped, tag = 'scoped memory for tpu_custom_call.1']
    #allocation7 [shape = 'u8[8192]{0}', space=vmem, size = 0x2000, scoped, tag = 'input window, operand 2']
    #allocation8 [shape = 's32[2]{0}', space=sflag, size = 0x8, scoped, tag = 'scoped memory for tpu_custom_call.1']
    #allocation9 [shape = 'u8[196608]{0}', space=vmem, size = 0x30000, scoped, tag = 'input window, operand 4, single buffered']
    #allocation10 [shape = 'u8[786432]{0}', space=vmem, size = 0xc0000, scoped, tag = 'input window, operand 8, single buffered']
    #allocation11 [shape = 's32[1]{0}', space=sflag, size = 0x4, scoped, tag = 'scoped memory for tpu_custom_call.1']
    #allocation12 [shape = 'u8[131072]{0}', space=vmem, size = 0x20000, scoped, tag = 'input window, operand 15, single buffered']
    #allocation13 [shape = 'u8[8192]{0}', space=vmem, size = 0x2000, scoped, tag = 'output window, operand 0']
    %26 = vsyncpa [#allocation5], 0
    %s27 = scalar_lea.sflag [#allocation5], 1
    %28 = vsyncpa %s27, 0
    %29 = vsyncpa [#allocation8], 0
    %s30 = scalar_lea.sflag [#allocation8], 1
    %31 = vsyncpa %s30, 0
    %32 = vsyncpa [#allocation11], 0
    %33 = vsyncpa [#allocation6], 0
    %s34 = scalar_lea.sflag [#allocation6], 1
    %35 = vsyncpa %s34, 0
    loop: start=0, step=1, limit=6
    $region2: #{tpu_custom_call.1} parent=1 // loop_pre_header
      _
    $region3: #{tpu_custom_call.1} parent=1 // loop_header
      %s37 = sphi 0, %s41
      %p38 = scmp.ge.s32.totalorder %s37, 6
      %s44 = sphi 0, %s56
      %s45 = sphi 0, %s52
      %s46 = sphi 0, %s44
      %s47 = sphi 0, %s45
      %s48 = sphi 0, %s46
      %s49 = sphi 0, %s47
      %s57 = sphi 0, %s57
      %s59 = sphi 0, %s57
      %s60 = sphi 0, %s59
      %s74 = sphi 0, %s60
      %s82 = sphi 0, %s84
      %s85 = sphi 0, %s82
      %s86 = sphi 0, %s85
      %s102 = sphi 0, %s86
      %s110 = sphi 0, %s112
      %s113 = sphi 0, %s110
      %s114 = sphi 0, %s113
      %s130 = sphi 0, %s114
      %s138 = sphi 0, %s140
      %s141 = sphi 0, %s138
      %s142 = sphi 0, %s141
      %s158 = sphi 0, %s142
      %s162 = sphi 0, %s162
      %s164 = sphi 0, %s162
      %s165 = sphi 0, %s164
      %s179 = sphi 0, %s165
      %s183 = sphi 0, %s183
      %s185 = sphi 0, %s183
      %s186 = sphi 0, %s185
      %s200 = sphi 0, %s186
      %s204 = sphi 0, %s204
      %s206 = sphi 0, %s204
      %s207 = sphi 0, %s206
      %s221 = sphi 0, %s207
      %s225 = sphi 0, %s225
      %s227 = sphi 0, %s225
      %s228 = sphi 0, %s227
      %s242 = sphi 0, %s228
      %s246 = sphi 0, %s246
      %s248 = sphi 0, %s246
      %s249 = sphi 0, %s248
      %s263 = sphi 0, %s249
      %s267 = sphi 0, %s267
      %s269 = sphi 0, %s267
      %s270 = sphi 0, %s269
      %s284 = sphi 0, %s270
      %s288 = sphi 0, %s288
      %s290 = sphi 0, %s288
      %s291 = sphi 0, %s290
      %s305 = sphi 0, %s291
      %s309 = sphi 0, %s309
      %s311 = sphi 0, %s309
      %s312 = sphi 0, %s311
      %s326 = sphi 0, %s312
      %s330 = sphi 0, %s330
      %s332 = sphi 0, %s330
      %s333 = sphi 0, %s332
      %s347 = sphi 0, %s333
      %s351 = sphi 0, %s351
      %s353 = sphi 0, %s351
      %s354 = sphi 0, %s353
      %s368 = sphi 0, %s354
      %s372 = sphi 0, %s372
      %s374 = sphi 0, %s372
      %s375 = sphi 0, %s374
      %s389 = sphi 0, %s375
      %s393 = sphi 0, %s393
      %s395 = sphi 0, %s393
      %s396 = sphi 0, %s395
      %s410 = sphi 0, %s396
      %s418 = sphi 0, %s420
      %s421 = sphi 0, %s418
      %s422 = sphi 0, %s421
      %s438 = sphi 0, %s422
      %s446 = sphi 0, %s448
      %s449 = sphi 0, %s446
      %s450 = sphi 0, %s449
      %s466 = sphi 0, %s450
    $region4: #{tpu_custom_call.1} parent=1 // loop_header_branch
      %40 = sbr.rel (%p38) target = $region8
    $region5: #{tpu_custom_call.1} parent=1 // loop_body
      %s42 = ssub.s32 %s37, 1
      %s43 = ssub.s32 %s37, 2
      %s50 = sadd.s32 1, %s45
      %p51 = scmp.ge.s32.totalorder %s50, 2
      %s52 = scalar_select %p51, 0, %s50
      %s53 = sadd.s32 1, %s44
      %s54 = scalar_select %p51, %s53, %s44
      %p55 = scmp.ge.s32.totalorder %s54, 2
      %s56 = scalar_select %p55, 0, %s54
      %s58 = sadd.s32 %s57, 1
      %p61 = scmp.eq.s32.totalorder %s37, 3
      %p62 = scmp.ne.s32.totalorder %s57, %s59
      %p63 = scmp.eq.s32.totalorder %s37, 0
      %p64 = por %p62, %p63
      %p65 = scmp.ne.s32.totalorder %s57, %s59
      %p66 = scmp.eq.s32.totalorder %s42, 3
      %p67 = por %p65, %p66
      %p68 = scmp.ne.s32.totalorder %s59, %s60
      %p69 = scmp.eq.s32.totalorder %s42, 0
      %p70 = por %p68, %p69
      %p71 = scmp.ne.s32.totalorder %s59, %s60
      %p72 = scmp.eq.s32.totalorder %s43, 3
      %p73 = por %p71, %p72
      %p75 = scmp.ne.s32.totalorder %s60, %s74
      %p76 = scmp.eq.s32.totalorder %s43, 0
      %p77 = por %p75, %p76
      %s78 = ssub.s32 %s44, %s56
      %s79 = ssub.s32 %s45, %s52
      %s80 = sor.u32 %s78, %s79
      %p81 = scmp.eq.s32.totalorder %s80, 0
      %s83 = sadd.s32 %s82, 1
      %s84 = scalar_select %p81, %s82, %s83
      %p87 = pneg %p81
      %p88 = scmp.eq.s32.totalorder %s37, 3
      %p89 = por %p87, %p88
      %p90 = scmp.ne.s32.totalorder %s82, %s85
      %p91 = scmp.eq.s32.totalorder %s37, 0
      %p92 = por %p90, %p91
      %p93 = scmp.ne.s32.totalorder %s82, %s85
      %p94 = scmp.eq.s32.totalorder %s42, 3
      %p95 = por %p93, %p94
      %p96 = scmp.ne.s32.totalorder %s85, %s86
      %p97 = scmp.eq.s32.totalorder %s42, 0
      %p98 = por %p96, %p97
      %p99 = scmp.ne.s32.totalorder %s85, %s86
      %p100 = scmp.eq.s32.totalorder %s43, 3
      %p101 = por %p99, %p100
      %p103 = scmp.ne.s32.totalorder %s86, %s102
      %p104 = scmp.eq.s32.totalorder %s43, 0
      %p105 = por %p103, %p104
      %s106 = ssub.s32 %s44, %s56
      %s107 = ssub.s32 %s45, %s52
      %s108 = sor.u32 %s106, %s107
      %p109 = scmp.eq.s32.totalorder %s108, 0
      %s111 = sadd.s32 %s110, 1
      %s112 = scalar_select %p109, %s110, %s111
      %p115 = pneg %p109
      %p116 = scmp.eq.s32.totalorder %s37, 3
      %p117 = por %p115, %p116
      %p118 = scmp.ne.s32.totalorder %s110, %s113
      %p119 = scmp.eq.s32.totalorder %s37, 0
      %p120 = por %p118, %p119
      %p121 = scmp.ne.s32.totalorder %s110, %s113
      %p122 = scmp.eq.s32.totalorder %s42, 3
      %p123 = por %p121, %p122
      %p124 = scmp.ne.s32.totalorder %s113, %s114
      %p125 = scmp.eq.s32.totalorder %s42, 0
      %p126 = por %p124, %p125
      %p127 = scmp.ne.s32.totalorder %s113, %s114
      %p128 = scmp.eq.s32.totalorder %s43, 3
      %p129 = por %p127, %p128
      %p131 = scmp.ne.s32.totalorder %s114, %s130
      %p132 = scmp.eq.s32.totalorder %s43, 0
      %p133 = por %p131, %p132
      %s134 = ssub.s32 %s44, %s56
      %s135 = ssub.s32 %s45, %s52
      %s136 = sor.u32 %s134, %s135
      %p137 = scmp.eq.s32.totalorder %s136, 0
      %s139 = sadd.s32 %s138, 1
      %s140 = scalar_select %p137, %s138, %s139
      %p143 = pneg %p137
      %p144 = scmp.eq.s32.totalorder %s37, 3
      %p145 = por %p143, %p144
      %p146 = scmp.ne.s32.totalorder %s138, %s141
      %p147 = scmp.eq.s32.totalorder %s37, 0
      %p148 = por %p146, %p147
      %p149 = scmp.ne.s32.totalorder %s138, %s141
      %p150 = scmp.eq.s32.totalorder %s42, 3
      %p151 = por %p149, %p150
      %p152 = scmp.ne.s32.totalorder %s141, %s142
      %p153 = scmp.eq.s32.totalorder %s42, 0
      %p154 = por %p152, %p153
      %p155 = scmp.ne.s32.totalorder %s141, %s142
      %p156 = scmp.eq.s32.totalorder %s43, 3
      %p157 = por %p155, %p156
      %p159 = scmp.ne.s32.totalorder %s142, %s158
      %p160 = scmp.eq.s32.totalorder %s43, 0
      %p161 = por %p159, %p160
      %s163 = sadd.s32 %s162, 1
      %p166 = scmp.eq.s32.totalorder %s37, 3
      %p167 = scmp.ne.s32.totalorder %s162, %s164
      %p168 = scmp.eq.s32.totalorder %s37, 0
      %p169 = por %p167, %p168
      %p170 = scmp.ne.s32.totalorder %s162, %s164
      %p171 = scmp.eq.s32.totalorder %s42, 3
      %p172 = por %p170, %p171
      %p173 = scmp.ne.s32.totalorder %s164, %s165
      %p174 = scmp.eq.s32.totalorder %s42, 0
      %p175 = por %p173, %p174
      %p176 = scmp.ne.s32.totalorder %s164, %s165
      %p177 = scmp.eq.s32.totalorder %s43, 3
      %p178 = por %p176, %p177
      %p180 = scmp.ne.s32.totalorder %s165, %s179
      %p181 = scmp.eq.s32.totalorder %s43, 0
      %p182 = por %p180, %p181
      %s184 = sadd.s32 %s183, 1
      %p187 = scmp.eq.s32.totalorder %s37, 3
      %p188 = scmp.ne.s32.totalorder %s183, %s185
      %p189 = scmp.eq.s32.totalorder %s37, 0
      %p190 = por %p188, %p189
      %p191 = scmp.ne.s32.totalorder %s183, %s185
      %p192 = scmp.eq.s32.totalorder %s42, 3
      %p193 = por %p191, %p192
      %p194 = scmp.ne.s32.totalorder %s185, %s186
      %p195 = scmp.eq.s32.totalorder %s42, 0
      %p196 = por %p194, %p195
      %p197 = scmp.ne.s32.totalorder %s185, %s186
      %p198 = scmp.eq.s32.totalorder %s43, 3
      %p199 = por %p197, %p198
      %p201 = scmp.ne.s32.totalorder %s186, %s200
      %p202 = scmp.eq.s32.totalorder %s43, 0
      %p203 = por %p201, %p202
      %s205 = sadd.s32 %s204, 1
      %p208 = scmp.eq.s32.totalorder %s37, 3
      %p209 = scmp.ne.s32.totalorder %s204, %s206
      %p210 = scmp.eq.s32.totalorder %s37, 0
      %p211 = por %p209, %p210
      %p212 = scmp.ne.s32.totalorder %s204, %s206
      %p213 = scmp.eq.s32.totalorder %s42, 3
      %p214 = por %p212, %p213
      %p215 = scmp.ne.s32.totalorder %s206, %s207
      %p216 = scmp.eq.s32.totalorder %s42, 0
      %p217 = por %p215, %p216
      %p218 = scmp.ne.s32.totalorder %s206, %s207
      %p219 = scmp.eq.s32.totalorder %s43, 3
      %p220 = por %p218, %p219
      %p222 = scmp.ne.s32.totalorder %s207, %s221
      %p223 = scmp.eq.s32.totalorder %s43, 0
      %p224 = por %p222, %p223
      %s226 = sadd.s32 %s225, 1
      %p229 = scmp.eq.s32.totalorder %s37, 3
      %p230 = scmp.ne.s32.totalorder %s225, %s227
      %p231 = scmp.eq.s32.totalorder %s37, 0
      %p232 = por %p230, %p231
      %p233 = scmp.ne.s32.totalorder %s225, %s227
      %p234 = scmp.eq.s32.totalorder %s42, 3
      %p235 = por %p233, %p234
      %p236 = scmp.ne.s32.totalorder %s227, %s228
      %p237 = scmp.eq.s32.totalorder %s42, 0
      %p238 = por %p236, %p237
      %p239 = scmp.ne.s32.totalorder %s227, %s228
      %p240 = scmp.eq.s32.totalorder %s43, 3
      %p241 = por %p239, %p240
      %p243 = scmp.ne.s32.totalorder %s228, %s242
      %p244 = scmp.eq.s32.totalorder %s43, 0
      %p245 = por %p243, %p244
      %s247 = sadd.s32 %s246, 1
      %p250 = scmp.eq.s32.totalorder %s37, 3
      %p251 = scmp.ne.s32.totalorder %s246, %s248
      %p252 = scmp.eq.s32.totalorder %s37, 0
      %p253 = por %p251, %p252
      %p254 = scmp.ne.s32.totalorder %s246, %s248
      %p255 = scmp.eq.s32.totalorder %s42, 3
      %p256 = por %p254, %p255
      %p257 = scmp.ne.s32.totalorder %s248, %s249
      %p258 = scmp.eq.s32.totalorder %s42, 0
      %p259 = por %p257, %p258
      %p260 = scmp.ne.s32.totalorder %s248, %s249
      %p261 = scmp.eq.s32.totalorder %s43, 3
      %p262 = por %p260, %p261
      %p264 = scmp.ne.s32.totalorder %s249, %s263
      %p265 = scmp.eq.s32.totalorder %s43, 0
      %p266 = por %p264, %p265
      %s268 = sadd.s32 %s267, 1
      %p271 = scmp.eq.s32.totalorder %s37, 3
      %p272 = scmp.ne.s32.totalorder %s267, %s269
      %p273 = scmp.eq.s32.totalorder %s37, 0
      %p274 = por %p272, %p273
      %p275 = scmp.ne.s32.totalorder %s267, %s269
      %p276 = scmp.eq.s32.totalorder %s42, 3
      %p277 = por %p275, %p276
      %p278 = scmp.ne.s32.totalorder %s269, %s270
      %p279 = scmp.eq.s32.totalorder %s42, 0
      %p280 = por %p278, %p279
      %p281 = scmp.ne.s32.totalorder %s269, %s270
      %p282 = scmp.eq.s32.totalorder %s43, 3
      %p283 = por %p281, %p282
      %p285 = scmp.ne.s32.totalorder %s270, %s284
      %p286 = scmp.eq.s32.totalorder %s43, 0
      %p287 = por %p285, %p286
      %s289 = sadd.s32 %s288, 1
      %p292 = scmp.eq.s32.totalorder %s37, 3
      %p293 = scmp.ne.s32.totalorder %s288, %s290
      %p294 = scmp.eq.s32.totalorder %s37, 0
      %p295 = por %p293, %p294
      %p296 = scmp.ne.s32.totalorder %s288, %s290
      %p297 = scmp.eq.s32.totalorder %s42, 3
      %p298 = por %p296, %p297
      %p299 = scmp.ne.s32.totalorder %s290, %s291
      %p300 = scmp.eq.s32.totalorder %s42, 0
      %p301 = por %p299, %p300
      %p302 = scmp.ne.s32.totalorder %s290, %s291
      %p303 = scmp.eq.s32.totalorder %s43, 3
      %p304 = por %p302, %p303
      %p306 = scmp.ne.s32.totalorder %s291, %s305
      %p307 = scmp.eq.s32.totalorder %s43, 0
      %p308 = por %p306, %p307
      %s310 = sadd.s32 %s309, 1
      %p313 = scmp.eq.s32.totalorder %s37, 3
      %p314 = scmp.ne.s32.totalorder %s309, %s311
      %p315 = scmp.eq.s32.totalorder %s37, 0
      %p316 = por %p314, %p315
      %p317 = scmp.ne.s32.totalorder %s309, %s311
      %p318 = scmp.eq.s32.totalorder %s42, 3
      %p319 = por %p317, %p318
      %p320 = scmp.ne.s32.totalorder %s311, %s312
      %p321 = scmp.eq.s32.totalorder %s42, 0
      %p322 = por %p320, %p321
      %p323 = scmp.ne.s32.totalorder %s311, %s312
      %p324 = scmp.eq.s32.totalorder %s43, 3
      %p325 = por %p323, %p324
      %p327 = scmp.ne.s32.totalorder %s312, %s326
      %p328 = scmp.eq.s32.totalorder %s43, 0
      %p329 = por %p327, %p328
      %s331 = sadd.s32 %s330, 1
      %p334 = scmp.eq.s32.totalorder %s37, 3
      %p335 = scmp.ne.s32.totalorder %s330, %s332
      %p336 = scmp.eq.s32.totalorder %s37, 0
      %p337 = por %p335, %p336
      %p338 = scmp.ne.s32.totalorder %s330, %s332
      %p339 = scmp.eq.s32.totalorder %s42, 3
      %p340 = por %p338, %p339
      %p341 = scmp.ne.s32.totalorder %s332, %s333
      %p342 = scmp.eq.s32.totalorder %s42, 0
      %p343 = por %p341, %p342
      %p344 = scmp.ne.s32.totalorder %s332, %s333
      %p345 = scmp.eq.s32.totalorder %s43, 3
      %p346 = por %p344, %p345
      %p348 = scmp.ne.s32.totalorder %s333, %s347
      %p349 = scmp.eq.s32.totalorder %s43, 0
      %p350 = por %p348, %p349
      %s352 = sadd.s32 %s351, 1
      %p355 = scmp.eq.s32.totalorder %s37, 3
      %p356 = scmp.ne.s32.totalorder %s351, %s353
      %p357 = scmp.eq.s32.totalorder %s37, 0
      %p358 = por %p356, %p357
      %p359 = scmp.ne.s32.totalorder %s351, %s353
      %p360 = scmp.eq.s32.totalorder %s42, 3
      %p361 = por %p359, %p360
      %p362 = scmp.ne.s32.totalorder %s353, %s354
      %p363 = scmp.eq.s32.totalorder %s42, 0
      %p364 = por %p362, %p363
      %p365 = scmp.ne.s32.totalorder %s353, %s354
      %p366 = scmp.eq.s32.totalorder %s43, 3
      %p367 = por %p365, %p366
      %p369 = scmp.ne.s32.totalorder %s354, %s368
      %p370 = scmp.eq.s32.totalorder %s43, 0
      %p371 = por %p369, %p370
      %s373 = sadd.s32 %s372, 1
      %p376 = scmp.eq.s32.totalorder %s37, 3
      %p377 = scmp.ne.s32.totalorder %s372, %s374
      %p378 = scmp.eq.s32.totalorder %s37, 0
      %p379 = por %p377, %p378
      %p380 = scmp.ne.s32.totalorder %s372, %s374
      %p381 = scmp.eq.s32.totalorder %s42, 3
      %p382 = por %p380, %p381
      %p383 = scmp.ne.s32.totalorder %s374, %s375
      %p384 = scmp.eq.s32.totalorder %s42, 0
      %p385 = por %p383, %p384
      %p386 = scmp.ne.s32.totalorder %s374, %s375
      %p387 = scmp.eq.s32.totalorder %s43, 3
      %p388 = por %p386, %p387
      %p390 = scmp.ne.s32.totalorder %s375, %s389
      %p391 = scmp.eq.s32.totalorder %s43, 0
      %p392 = por %p390, %p391
      %s394 = sadd.s32 %s393, 1
      %p397 = scmp.eq.s32.totalorder %s37, 3
      %p398 = scmp.ne.s32.totalorder %s393, %s395
      %p399 = scmp.eq.s32.totalorder %s37, 0
      %p400 = por %p398, %p399
      %p401 = scmp.ne.s32.totalorder %s393, %s395
      %p402 = scmp.eq.s32.totalorder %s42, 3
      %p403 = por %p401, %p402
      %p404 = scmp.ne.s32.totalorder %s395, %s396
      %p405 = scmp.eq.s32.totalorder %s42, 0
      %p406 = por %p404, %p405
      %p407 = scmp.ne.s32.totalorder %s395, %s396
      %p408 = scmp.eq.s32.totalorder %s43, 3
      %p409 = por %p407, %p408
      %p411 = scmp.ne.s32.totalorder %s396, %s410
      %p412 = scmp.eq.s32.totalorder %s43, 0
      %p413 = por %p411, %p412
      %s414 = ssub.s32 %s44, %s56
      %s415 = ssub.s32 %s45, %s52
      %s416 = sor.u32 %s414, %s415
      %p417 = scmp.eq.s32.totalorder %s416, 0
      %s419 = sadd.s32 %s418, 1
      %s420 = scalar_select %p417, %s418, %s419
      %p423 = pneg %p417
      %p424 = scmp.eq.s32.totalorder %s37, 3
      %p425 = por %p423, %p424
      %p426 = scmp.ne.s32.totalorder %s418, %s421
      %p427 = scmp.eq.s32.totalorder %s37, 0
      %p428 = por %p426, %p427
      %p429 = scmp.ne.s32.totalorder %s418, %s421
      %p430 = scmp.eq.s32.totalorder %s42, 3
      %p431 = por %p429, %p430
      %p432 = scmp.ne.s32.totalorder %s421, %s422
      %p433 = scmp.eq.s32.totalorder %s42, 0
      %p434 = por %p432, %p433
      %p435 = scmp.ne.s32.totalorder %s421, %s422
      %p436 = scmp.eq.s32.totalorder %s43, 3
      %p437 = por %p435, %p436
      %p439 = scmp.ne.s32.totalorder %s422, %s438
      %p440 = scmp.eq.s32.totalorder %s43, 0
      %p441 = por %p439, %p440
      %s442 = ssub.s32 %s44, %s56
      %s443 = ssub.s32 %s45, %s52
      %s444 = sor.u32 %s442, %s443
      %p445 = scmp.eq.s32.totalorder %s444, 0
      %s447 = sadd.s32 %s446, 1
      %s448 = scalar_select %p445, %s446, %s447
      %p451 = pneg %p445
      %p452 = scmp.eq.s32.totalorder %s37, 3
      %p453 = por %p451, %p452
      %p454 = scmp.ne.s32.totalorder %s446, %s449
      %p455 = scmp.eq.s32.totalorder %s37, 0
      %p456 = por %p454, %p455
      %p457 = scmp.ne.s32.totalorder %s446, %s449
      %p458 = scmp.eq.s32.totalorder %s42, 3
      %p459 = por %p457, %p458
      %p460 = scmp.ne.s32.totalorder %s449, %s450
      %p461 = scmp.eq.s32.totalorder %s42, 0
      %p462 = por %p460, %p461
      %p463 = scmp.ne.s32.totalorder %s449, %s450
      %p464 = scmp.eq.s32.totalorder %s43, 3
      %p465 = por %p463, %p464
      %p467 = scmp.ne.s32.totalorder %s450, %s466
      %p468 = scmp.eq.s32.totalorder %s43, 0
      %p469 = por %p467, %p468
      %p470 = scmp.le.s32.totalorder 1, %s37
      %p471 = scmp.lt.s32.totalorder %s37, 5
      %p472 = pnand %p470, %p471
      %p473 = pneg %p472
      // Predicated region
      $region9: #{tpu_custom_call.1} parent=5 // pred_check
        _
      $region10: #{tpu_custom_call.1} parent=5 // pred_check_branch
        %475 = sbr.rel (%p472) target = $region12
      $region11: #{tpu_custom_call.1} parent=5 // pred_region
        %s476 = ssub.s32 %s37, 1
        // Predicated region
        $region13: #{tpu_custom_call.1} parent=11 // pred_check
          %p477 = pneg %p70
        $region14: #{tpu_custom_call.1} parent=11 // pred_check_branch
          %479 = sbr.rel (%p477) target = $region16
        $region15: #{tpu_custom_call.1} parent=11 // pred_region
          _
        $region16: #{tpu_custom_call.1} parent=11 // pred_fallthru
          _
        // Predicated region
        $region17: #{tpu_custom_call.1} parent=11 // pred_check
          %p480 = pneg %p175
        $region18: #{tpu_custom_call.1} parent=11 // pred_check_branch
          %482 = sbr.rel (%p480) target = $region20
        $region19: #{tpu_custom_call.1} parent=11 // pred_region
          %s484 = ssub.s32 6144, 6144
          %485 = vsyncadd [#allocation8], %s484
          %s486 = sshll.u32 [#allocation9], 4
          %s487 = int_to_ptr.vmem [resolvable:$true] %s486
          %492 = dma.hbm_to_vmem [thread:$0]  %s4, 6144, %s487, [#allocation8], 256, 256, 16
        $region20: #{tpu_custom_call.1} parent=11 // pred_fallthru
          _
        // Predicated region
        $region21: #{tpu_custom_call.1} parent=11 // pred_check
          %p493 = pneg %p196
        $region22: #{tpu_custom_call.1} parent=11 // pred_check_branch
          %495 = sbr.rel (%p493) target = $region24
        $region23: #{tpu_custom_call.1} parent=11 // pred_region
          _
        $region24: #{tpu_custom_call.1} parent=11 // pred_fallthru
          _
        // Predicated region
        $region25: #{tpu_custom_call.1} parent=11 // pred_check
          %p496 = pneg %p217
        $region26: #{tpu_custom_call.1} parent=11 // pred_check_branch
          %498 = sbr.rel (%p496) target = $region28
        $region27: #{tpu_custom_call.1} parent=11 // pred_region
          _
        $region28: #{tpu_custom_call.1} parent=11 // pred_fallthru
          _
        // Predicated region
        $region29: #{tpu_custom_call.1} parent=11 // pred_check
          %p499 = pneg %p238
        $region30: #{tpu_custom_call.1} parent=11 // pred_check_branch
          %501 = sbr.rel (%p499) target = $region32
        $region31: #{tpu_custom_call.1} parent=11 // pred_region
          _
        $region32: #{tpu_custom_call.1} parent=11 // pred_fallthru
          _
        // Predicated region
        $region33: #{tpu_custom_call.1} parent=11 // pred_check
          %p502 = pneg %p259
        $region34: #{tpu_custom_call.1} parent=11 // pred_check_branch
          %504 = sbr.rel (%p502) target = $region36
        $region35: #{tpu_custom_call.1} parent=11 // pred_region
          %s506 = ssub.s32 24576, 24576
          %507 = vsyncadd [#allocation11], %s506
          %s508 = sshll.u32 [#allocation10], 4
          %s509 = int_to_ptr.vmem [resolvable:$true] %s508
          %514 = dma.hbm_to_vmem [thread:$0]  %s8, 24576, %s509, [#allocation11], 256, 256, 16
        $region36: #{tpu_custom_call.1} parent=11 // pred_fallthru
          _
        // Predicated region
        $region37: #{tpu_custom_call.1} parent=11 // pred_check
          %p515 = pneg %p280
        $region38: #{tpu_custom_call.1} parent=11 // pred_check_branch
          %517 = sbr.rel (%p515) target = $region40
        $region39: #{tpu_custom_call.1} parent=11 // pred_region
          _
        $region40: #{tpu_custom_call.1} parent=11 // pred_fallthru
          _
        // Predicated region
        $region41: #{tpu_custom_call.1} parent=11 // pred_check
          %p518 = pneg %p301
        $region42: #{tpu_custom_call.1} parent=11 // pred_check_branch
          %520 = sbr.rel (%p518) target = $region44
        $region43: #{tpu_custom_call.1} parent=11 // pred_region
          _
        $region44: #{tpu_custom_call.1} parent=11 // pred_fallthru
          _
        // Predicated region
        $region45: #{tpu_custom_call.1} parent=11 // pred_check
          %p521 = pneg %p322
        $region46: #{tpu_custom_call.1} parent=11 // pred_check_branch
          %523 = sbr.rel (%p521) target = $region48
        $region47: #{tpu_custom_call.1} parent=11 // pred_region
          _
        $region48: #{tpu_custom_call.1} parent=11 // pred_fallthru
          _
        // Predicated region
        $region49: #{tpu_custom_call.1} parent=11 // pred_check
          %p524 = pneg %p343
        $region50: #{tpu_custom_call.1} parent=11 // pred_check_branch
          %526 = sbr.rel (%p524) target = $region52
        $region51: #{tpu_custom_call.1} parent=11 // pred_region
          _
        $region52: #{tpu_custom_call.1} parent=11 // pred_fallthru
          _
        // Predicated region
        $region53: #{tpu_custom_call.1} parent=11 // pred_check
          %p527 = pneg %p364
        $region54: #{tpu_custom_call.1} parent=11 // pred_check_branch
          %529 = sbr.rel (%p527) target = $region56
        $region55: #{tpu_custom_call.1} parent=11 // pred_region
          _
        $region56: #{tpu_custom_call.1} parent=11 // pred_fallthru
          _
        // Predicated region
        $region57: #{tpu_custom_call.1} parent=11 // pred_check
          %p530 = pneg %p385
        $region58: #{tpu_custom_call.1} parent=11 // pred_check_branch
          %532 = sbr.rel (%p530) target = $region60
        $region59: #{tpu_custom_call.1} parent=11 // pred_region
          _
        $region60: #{tpu_custom_call.1} parent=11 // pred_fallthru
          _
        // Predicated region
        $region61: #{tpu_custom_call.1} parent=11 // pred_check
          %p533 = pneg %p406
        $region62: #{tpu_custom_call.1} parent=11 // pred_check_branch
          %535 = sbr.rel (%p533) target = $region64
        $region63: #{tpu_custom_call.1} parent=11 // pred_region
          %s537 = ssub.s32 4096, 4096
          %538 = vsyncadd [#allocation11], %s537
          %s539 = sshll.u32 [#allocation12], 4
          %s540 = int_to_ptr.vmem [resolvable:$true] %s539
          %545 = dma.hbm_to_vmem [thread:$0]  %s15, 4096, %s540, [#allocation11], 128, 128, 8
        $region64: #{tpu_custom_call.1} parent=11 // pred_fallthru
          _
      $region12: #{tpu_custom_call.1} parent=5 // pred_fallthru
        _
      %p546 = scmp.lt.s32.totalorder %s37, 4
      // Predicated region
      $region65: #{tpu_custom_call.1} parent=5 // pred_check
        %p547 = pneg %p546
      $region66: #{tpu_custom_call.1} parent=5 // pred_check_branch
        %549 = sbr.rel (%p547) target = $region68
      $region67: #{tpu_custom_call.1} parent=5 // pred_region
        // Predicated region
        $region69: #{tpu_custom_call.1} parent=67 // pred_check
          %p550 = pneg %p92
        $region70: #{tpu_custom_call.1} parent=67 // pred_check_branch
          %552 = sbr.rel (%p550) target = $region72
        $region71: #{tpu_custom_call.1} parent=67 // pred_region
          %s553 = sand.u32 %s82, 1
          %s554 = scalar_lea.sflag [#allocation5], %s553
          %s555 = sand.u32 %s82, 1
          %s556 = smul.addr %s555, 2
          %s557 = scalar_lea.vmem [#allocation4], %s556
          %s559 = ssub.s32 32, 32
          %560 = vsyncadd %s554, %s559
          %s561 = smul.addr %s44, 2
          %s562 = sadd.s32 %s45, %s561
          %s563 = smul.addr %s562, 32
          %s564 = scalar_lea.hbm %s1, %s563
          %s566 = sshll.u32 %s557, 4
          %s567 = int_to_ptr.vmem [resolvable:$true] %s566
          %569 = dma.hbm_to_vmem [thread:$0]  %s564, 32, %s567, %s554
        $region72: #{tpu_custom_call.1} parent=67 // pred_fallthru
          _
        // Predicated region
        $region73: #{tpu_custom_call.1} parent=67 // pred_check
          %p570 = pneg %p120
        $region74: #{tpu_custom_call.1} parent=67 // pred_check_branch
          %572 = sbr.rel (%p570) target = $region76
        $region75: #{tpu_custom_call.1} parent=67 // pred_region
          %s573 = sand.u32 %s37, 1
          %s574 = scalar_lea.sflag [#allocation8], %s573
          %s575 = sand.u32 %s110, 1
          %s576 = smul.addr %s575, 8
          %s577 = scalar_lea.vmem [#allocation7], %s576
          %s579 = ssub.s32 128, 128
          %580 = vsyncadd %s574, %s579
          %s581 = smul.addr %s44, 2
          %s582 = sadd.s32 %s45, %s581
          %s583 = smul.addr %s582, 128
          %s584 = scalar_lea.hbm %s2, %s583
          %s586 = sshll.u32 %s577, 4
          %s587 = int_to_ptr.vmem [resolvable:$true] %s586
          %589 = dma.hbm_to_vmem [thread:$0]  %s584, 128, %s587, %s574
        $region76: #{tpu_custom_call.1} parent=67 // pred_fallthru
          _
        // Predicated region
        $region77: #{tpu_custom_call.1} parent=67 // pred_check
          %p590 = pneg %p148
        $region78: #{tpu_custom_call.1} parent=67 // pred_check_branch
          %592 = sbr.rel (%p590) target = $region80
        $region79: #{tpu_custom_call.1} parent=67 // pred_region
          %p593 = scmp.lt.s32.totalorder %s44, 1
          %s594 = scalar_select %p593, %s44, 1
          %p595 = scmp.lt.s32.totalorder %s45, 1
          %s596 = scalar_select %p595, %s45, 1
          %s597 = smul.addr %s594, 2
          %s598 = sadd.s32 %s596, %s597
          %s599 = smul.addr %s598, 2
          %s600 = scalar_lea.vmem %s3, %s599
        $region80: #{tpu_custom_call.1} parent=67 // pred_fallthru
          _
      $region68: #{tpu_custom_call.1} parent=5 // pred_fallthru
        _
      %p601 = scmp.le.s32.totalorder 1, %s37
      %p602 = scmp.lt.s32.totalorder %s37, 5
      %p603 = pnand %p601, %p602
      %p604 = pneg %p603
      // Predicated region
      $region81: #{tpu_custom_call.1} parent=5 // pred_check
        _
      $region82: #{tpu_custom_call.1} parent=5 // pred_check_branch
        %606 = sbr.rel (%p603) target = $region84
      $region83: #{tpu_custom_call.1} parent=5 // pred_region
        %s607 = ssub.s32 %s37, 1
        %s608 = sand.u32 %s85, 1
        %s609 = scalar_lea.sflag [#allocation5], %s608
        %s610 = sand.u32 %s85, 1
        %s611 = smul.addr %s610, 2
        %s612 = scalar_lea.vmem [#allocation4], %s611
        // Predicated region
        $region85: #{tpu_custom_call.1} parent=83 // pred_check
          %p613 = pneg %p98
        $region86: #{tpu_custom_call.1} parent=83 // pred_check_branch
          %615 = sbr.rel (%p613) target = $region88
        $region87: #{tpu_custom_call.1} parent=83 // pred_region
          %616 = dma.done %s609, 32
        $region88: #{tpu_custom_call.1} parent=83 // pred_fallthru
          _
        %s617 = sand.u32 %s42, 1
        %s618 = scalar_lea.sflag [#allocation8], %s617
        %s619 = sand.u32 %s113, 1
        %s620 = smul.addr %s619, 8
        %s621 = scalar_lea.vmem [#allocation7], %s620
        // Predicated region
        $region89: #{tpu_custom_call.1} parent=83 // pred_check
          %p622 = pneg %p126
        $region90: #{tpu_custom_call.1} parent=83 // pred_check_branch
          %624 = sbr.rel (%p622) target = $region92
        $region91: #{tpu_custom_call.1} parent=83 // pred_region
          %625 = dma.done %s618, 128
        $region92: #{tpu_custom_call.1} parent=83 // pred_fallthru
          _
        // Predicated region
        $region93: #{tpu_custom_call.1} parent=83 // pred_check
          %p626 = pneg %p175
        $region94: #{tpu_custom_call.1} parent=83 // pred_check_branch
          %628 = sbr.rel (%p626) target = $region96
        $region95: #{tpu_custom_call.1} parent=83 // pred_region
          %629 = dma.done [#allocation8], 6144
        $region96: #{tpu_custom_call.1} parent=83 // pred_fallthru
          _
        // Predicated region
        $region97: #{tpu_custom_call.1} parent=83 // pred_check
          %p630 = pneg %p259
        $region98: #{tpu_custom_call.1} parent=83 // pred_check_branch
          %632 = sbr.rel (%p630) target = $region100
        $region99: #{tpu_custom_call.1} parent=83 // pred_region
          %633 = dma.done [#allocation11], 24576
        $region100: #{tpu_custom_call.1} parent=83 // pred_fallthru
          _
        // Predicated region
        $region101: #{tpu_custom_call.1} parent=83 // pred_check
          %p634 = pneg %p406
        $region102: #{tpu_custom_call.1} parent=83 // pred_check_branch
          %636 = sbr.rel (%p634) target = $region104
        $region103: #{tpu_custom_call.1} parent=83 // pred_region
          %637 = dma.done [#allocation11], 4096
        $region104: #{tpu_custom_call.1} parent=83 // pred_fallthru
          _
        %p638 = pneg %p70
        %p639 = pneg %p67
        %s640 = sand.u32 %s85, 1
        %s641 = scalar_lea.sflag [#allocation5], %s640
        %s642 = sand.u32 %s85, 1
        %s643 = smul.addr %s642, 2
        %s644 = scalar_lea.vmem [#allocation4], %s643
        %p645 = pneg %p98
        %p646 = pneg %p95
        %s647 = sand.u32 %s42, 1
        %s648 = scalar_lea.sflag [#allocation8], %s647
        %s649 = sand.u32 %s113, 1
        %s650 = smul.addr %s649, 8
        %s651 = scalar_lea.vmem [#allocation7], %s650
        %p652 = pneg %p126
        %p653 = pneg %p123
        %p654 = scmp.lt.s32.totalorder %s46, 1
        %s655 = scalar_select %p654, %s46, 1
        %p656 = scmp.lt.s32.totalorder %s47, 1
        %s657 = scalar_select %p656, %s47, 1
        %s658 = smul.addr %s655, 2
        %s659 = sadd.s32 %s657, %s658
        %s660 = smul.addr %s659, 2
        %s661 = scalar_lea.vmem %s3, %s660
        %p662 = pneg %p154
        %p663 = pneg %p151
        %p664 = pneg %p175
        %p665 = pneg %p172
        %p666 = pneg %p196
        %p667 = pneg %p193
        %p668 = pneg %p217
        %p669 = pneg %p214
        %p670 = pneg %p238
        %p671 = pneg %p235
        %p672 = pneg %p259
        %p673 = pneg %p256
        %p674 = pneg %p280
        %p675 = pneg %p277
        %p676 = pneg %p301
        %p677 = pneg %p298
        %p678 = pneg %p322
        %p679 = pneg %p319
        %p680 = pneg %p343
        %p681 = pneg %p340
        %p682 = pneg %p364
        %p683 = pneg %p361
        %p684 = pneg %p385
        %p685 = pneg %p382
        %p686 = pneg %p406
        %p687 = pneg %p403
        %p688 = pneg %p434
        %p689 = pneg %p431
        %s690 = sand.u32 %s421, 1
        %s691 = scalar_lea.sflag [#allocation6], %s690
        %s692 = sand.u32 %s421, 1
        %s693 = smul.addr %s692, 8
        %s694 = scalar_lea.vmem [#allocation13], %s693
        %p695 = pneg %p462
        %p696 = pneg %p459
        %p697 = scmp.lt.s32.totalorder %s46, 1
        %s698 = scalar_select %p697, %s46, 1
        %p699 = scmp.lt.s32.totalorder %s47, 1
        %s700 = scalar_select %p699, %s47, 1
        %s701 = smul.addr %s698, 2
        %s702 = sadd.s32 %s700, %s701
        %s703 = smul.addr %s702, 8
        %s704 = scalar_lea.vmem %s17, %s703
        %p705 = scmp.lt.s32.totalorder %s46, 1
        %s706 = scalar_select %p705, %s46, 1
        %p707 = scmp.lt.s32.totalorder %s47, 1
        %s708 = scalar_select %p707, %s47, 1
        %s709 = smul.addr %s706, 2
        %s710 = sadd.s32 %s708, %s709
        %s711 = smul.addr %s710, 2
        %s712 = scalar_lea.vmem %s3, %s711
        %p713 = scmp.lt.s32.totalorder %s46, 1
        %s714 = scalar_select %p713, %s46, 1
        %p715 = scmp.lt.s32.totalorder %s47, 1
        %s716 = scalar_select %p715, %s47, 1
        %s717 = smul.addr %s714, 2
        %s718 = sadd.s32 %s716, %s717
        %s719 = smul.addr %s718, 8
        %s720 = scalar_lea.vmem %s17, %s719
        %v721 = vld [vmem:[%s621] sm:$0xff]
        %v722 = vld [vmem:[%s612] sm:$0x3]
        %v723 = vld [vmem:[%s712] sm:$0x3]
        %v725 = vrot.slane %v721, 6
        %v728 = vrot.slane %v723, 6
        %vm730 = vcmask 1041408
        %v731 = vsel %vm730, %v722, %v725
        %v732 = vsel %vm730, %v725, %v728
        %v733 = vld [vmem:[#allocation9] sm:$0xff]
        %v734 = vld [vmem:[#allocation9 + $0x8] sm:$0xff]
        %v735 = vld [vmem:[#allocation9 + $0x10] sm:$0xff]
        %v736 = vld [vmem:[#allocation9 + $0x18] sm:$0xff]
        %v737 = vld [vmem:[#allocation9 + $0x20] sm:$0xff]
        %v738 = vld [vmem:[#allocation9 + $0x28] sm:$0xff]
        %v739 = vld [vmem:[#allocation9 + $0x30] sm:$0xff]
        %v740 = vld [vmem:[#allocation9 + $0x38] sm:$0xff]
        %v741 = vld [vmem:[#allocation9 + $0x40] sm:$0xff]
        %v742 = vld [vmem:[#allocation9 + $0x48] sm:$0xff]
        %v743 = vld [vmem:[#allocation9 + $0x50] sm:$0xff]
        %v744 = vld [vmem:[#allocation9 + $0x58] sm:$0xff]
        %v745 = vld [vmem:[#allocation9 + $0x60] sm:$0xff]
        %v746 = vld [vmem:[#allocation9 + $0x68] sm:$0xff]
        %v747 = vld [vmem:[#allocation9 + $0x70] sm:$0xff]
        %v748 = vld [vmem:[#allocation9 + $0x78] sm:$0xff]
        %s749 = scalar_lea.vmem [#allocation9], 128
        %v750 = vld [vmem:[%s749] sm:$0xff]
        %v751 = vld [vmem:[%s749 + $0x8] sm:$0xff]
        %v752 = vld [vmem:[%s749 + $0x10] sm:$0xff]
        %v753 = vld [vmem:[%s749 + $0x18] sm:$0xff]
        %v754 = vld [vmem:[%s749 + $0x20] sm:$0xff]
        %v755 = vld [vmem:[%s749 + $0x28] sm:$0xff]
        %v756 = vld [vmem:[%s749 + $0x30] sm:$0xff]
        %v757 = vld [vmem:[%s749 + $0x38] sm:$0xff]
        %v758 = vld [vmem:[%s749 + $0x40] sm:$0xff]
        %v759 = vld [vmem:[%s749 + $0x48] sm:$0xff]
        %v760 = vld [vmem:[%s749 + $0x50] sm:$0xff]
        %v761 = vld [vmem:[%s749 + $0x58] sm:$0xff]
        %v762 = vld [vmem:[%s749 + $0x60] sm:$0xff]
        %v763 = vld [vmem:[%s749 + $0x68] sm:$0xff]
        %v764 = vld [vmem:[%s749 + $0x70] sm:$0xff]
        %v765 = vld [vmem:[%s749 + $0x78] sm:$0xff]
        %vm768 = vcmask 1046528
        %v769 = vrot.slane %v731, 1
        %v770 = vrot.slane %v732, 1
        %v771 = vsel %vm768, %v769, %v770
        %vm772 = vcmask 523264
        %v773 = vsel %vm772, %v771, 0
        %v775 = vsel %vm772, %v770, 0
        %777 = vmatprep.subr.mxu0 %v751
        %778 = vmatpush1.msra.mxu0 %v750
        %779 = vmatprep.subr.mxu0 %v753
        %780 = vmatpush1.msra.mxu0 %v752
        %781 = vmatprep.subr.mxu0 %v755
        %782 = vmatpush1.msra.mxu0 %v754
        %783 = vmatprep.subr.mxu0 %v757
        %784 = vmatpush1.msra.mxu0 %v756
        %785 = vmatprep.subr.mxu0 %v759
        %786 = vmatpush1.msra.mxu0 %v758
        %787 = vmatprep.subr.mxu0 %v761
        %788 = vmatpush1.msra.mxu0 %v760
        %789 = vmatprep.subr.mxu0 %v763
        %790 = vmatpush1.msra.mxu0 %v762
        %791 = vmatprep.subr.mxu0 %v765
        %792 = vmatpush1.msra.mxu0 %v764
        %793 = vmatprep.subr.mxu0 0.0
        %794 = vmatpush1.msra.mxu0 0.0
        %795 = vmatprep.subr.mxu0 0.0
        %796 = vmatpush1.msra.mxu0 0.0
        %797 = vmatprep.subr.mxu0 0.0
        %798 = vmatpush1.msra.mxu0 0.0
        %799 = vmatprep.subr.mxu0 0.0
        %800 = vmatpush1.msra.mxu0 0.0
        %801 = vmatprep.subr.mxu0 0.0
        %802 = vmatpush1.msra.mxu0 0.0
        %803 = vmatprep.subr.mxu0 0.0
        %804 = vmatpush1.msra.mxu0 0.0
        %805 = vmatprep.subr.mxu0 0.0
        %806 = vmatpush1.msra.mxu0 0.0
        %807 = vmatprep.subr.mxu0 0.0
        %808 = vmatpush1.msra.mxu0 0.0
        %809 = vmatprep.subr.mxu0 0.0
        %810 = vmatpush1.msra.mxu0 0.0
        %811 = vmatprep.subr.mxu0 0.0
        %812 = vmatpush1.msra.mxu0 0.0
        %813 = vmatprep.subr.mxu0 0.0
        %814 = vmatpush1.msra.mxu0 0.0
        %815 = vmatprep.subr.mxu0 0.0
        %816 = vmatpush1.msra.mxu0 0.0
        %817 = vmatprep.subr.mxu0 0.0
        %818 = vmatpush1.msra.mxu0 0.0
        %819 = vmatprep.subr.mxu0 0.0
        %820 = vmatpush1.msra.mxu0 0.0
        %821 = vmatprep.subr.mxu0 0.0
        %822 = vmatpush1.msra.mxu0 0.0
        %823 = vmatprep.subr.mxu0 0.0
        %824 = vmatpush1.msra.mxu0 0.0
        %825 = vmatprep.subr.mxu0 0.0
        %826 = vmatpush1.msra.mxu0 0.0
        %827 = vmatprep.subr.mxu0 0.0
        %828 = vmatpush1.msra.mxu0 0.0
        %829 = vmatprep.subr.mxu0 0.0
        %830 = vmatpush1.msra.mxu0 0.0
        %831 = vmatprep.subr.mxu0 0.0
        %832 = vmatpush1.msra.mxu0 0.0
        %833 = vmatprep.subr.mxu0 0.0
        %834 = vmatpush1.msra.mxu0 0.0
        %835 = vmatprep.subr.mxu0 0.0
        %836 = vmatpush1.msra.mxu0 0.0
        %837 = vmatprep.subr.mxu0 0.0
        %838 = vmatpush1.msra.mxu0 0.0
        %839 = vmatprep.subr.mxu0 0.0
        %840 = vmatpush1.msra.mxu0 0.0
        %841 = vmatprep.mubr.f32.mxu0 0.0
        %842 = vmatmul.mubr.f32.gmra.mrb[0].mxu0 %v773
        %v843 = vpop.f32.mrb[0].mxu0
        %v844 = vadd.f32 0.0, %v843
        %v845 = vpop.f32.mrb[0].mxu0
        %v846 = vadd.f32 0.0, %v845
        %847 = vmatprep.mubr.f32.mxu0 0.0
        %848 = vmatmul.mubr.f32.gmra.mrb[0].mxu0 %v775
        %v849 = vpop.f32.mrb[0].mxu0
        %v850 = vadd.f32 0.0, %v849
        %v851 = vpop.f32.mrb[0].mxu0
        %v852 = vadd.f32 0.0, %v851
        %853 = vdwg.mxu0
        %v854 = vsel %vm772, %v731, 0
        %v856 = vsel %vm772, %v732, 0
        %858 = vmatprep.subr.mxu0 %v734
        %859 = vmatpush1.msra.mxu0 %v733
        %860 = vmatprep.subr.mxu0 %v736
        %861 = vmatpush1.msra.mxu0 %v735
        %862 = vmatprep.subr.mxu0 %v738
        %863 = vmatpush1.msra.mxu0 %v737
        %864 = vmatprep.subr.mxu0 %v740
        %865 = vmatpush1.msra.mxu0 %v739
        %866 = vmatprep.subr.mxu0 %v742
        %867 = vmatpush1.msra.mxu0 %v741
        %868 = vmatprep.subr.mxu0 %v744
        %869 = vmatpush1.msra.mxu0 %v743
        %870 = vmatprep.subr.mxu0 %v746
        %871 = vmatpush1.msra.mxu0 %v745
        %872 = vmatprep.subr.mxu0 %v748
        %873 = vmatpush1.msra.mxu0 %v747
        %874 = vmatprep.subr.mxu0 0.0
        %875 = vmatpush1.msra.mxu0 0.0
        %876 = vmatprep.subr.mxu0 0.0
        %877 = vmatpush1.msra.mxu0 0.0
        %878 = vmatprep.subr.mxu0 0.0
        %879 = vmatpush1.msra.mxu0 0.0
        %880 = vmatprep.subr.mxu0 0.0
        %881 = vmatpush1.msra.mxu0 0.0
        %882 = vmatprep.subr.mxu0 0.0
        %883 = vmatpush1.msra.mxu0 0.0
        %884 = vmatprep.subr.mxu0 0.0
        %885 = vmatpush1.msra.mxu0 0.0
        %886 = vmatprep.subr.mxu0 0.0
        %887 = vmatpush1.msra.mxu0 0.0
        %888 = vmatprep.subr.mxu0 0.0
        %889 = vmatpush1.msra.mxu0 0.0
        %890 = vmatprep.subr.mxu0 0.0
        %891 = vmatpush1.msra.mxu0 0.0
        %892 = vmatprep.subr.mxu0 0.0
        %893 = vmatpush1.msra.mxu0 0.0
        %894 = vmatprep.subr.mxu0 0.0
        %895 = vmatpush1.msra.mxu0 0.0
        %896 = vmatprep.subr.mxu0 0.0
        %897 = vmatpush1.msra.mxu0 0.0
        %898 = vmatprep.subr.mxu0 0.0
        %899 = vmatpush1.msra.mxu0 0.0
        %900 = vmatprep.subr.mxu0 0.0
        %901 = vmatpush1.msra.mxu0 0.0
        %902 = vmatprep.subr.mxu0 0.0
        %903 = vmatpush1.msra.mxu0 0.0
        %904 = vmatprep.subr.mxu0 0.0
        %905 = vmatpush1.msra.mxu0 0.0
        %906 = vmatprep.subr.mxu0 0.0
        %907 = vmatpush1.msra.mxu0 0.0
        %908 = vmatprep.subr.mxu0 0.0
        %909 = vmatpush1.msra.mxu0 0.0
        %910 = vmatprep.subr.mxu0 0.0
        %911 = vmatpush1.msra.mxu0 0.0
        %912 = vmatprep.subr.mxu0 0.0
        %913 = vmatpush1.msra.mxu0 0.0
        %914 = vmatprep.subr.mxu0 0.0
        %915 = vmatpush1.msra.mxu0 0.0
        %916 = vmatprep.subr.mxu0 0.0
        %917 = vmatpush1.msra.mxu0 0.0
        %918 = vmatprep.subr.mxu0 0.0
        %919 = vmatpush1.msra.mxu0 0.0
        %920 = vmatprep.subr.mxu0 0.0
        %921 = vmatpush1.msra.mxu0 0.0
        %922 = vmatprep.mubr.f32.mxu0 0.0
        %923 = vmatmul.mubr.f32.gmra.mrb[0].mxu0 %v854
        %v924 = vpop.f32.mrb[0].mxu0
        %v925 = vadd.f32 %v844, %v924
        %v926 = vpop.f32.mrb[0].mxu0
        %v927 = vadd.f32 %v846, %v926
        %928 = vmatprep.mubr.f32.mxu0 0.0
        %929 = vmatmul.mubr.f32.gmra.mrb[0].mxu0 %v856
        %v930 = vpop.f32.mrb[0].mxu0
        %v931 = vadd.f32 %v850, %v930
        %v932 = vpop.f32.mrb[0].mxu0
        %v933 = vadd.f32 %v852, %v932
        %934 = vdwg.mxu0
        %s935 = scalar_lea.vmem [#allocation9], 256
        %v936 = vld [vmem:[%s935] sm:$0xff]
        %v937 = vld [vmem:[%s935 + $0x8] sm:$0xff]
        %v938 = vld [vmem:[%s935 + $0x10] sm:$0xff]
        %v939 = vld [vmem:[%s935 + $0x18] sm:$0xff]
        %v940 = vld [vmem:[%s935 + $0x20] sm:$0xff]
        %v941 = vld [vmem:[%s935 + $0x28] sm:$0xff]
        %v942 = vld [vmem:[%s935 + $0x30] sm:$0xff]
        %v943 = vld [vmem:[%s935 + $0x38] sm:$0xff]
        %v944 = vld [vmem:[%s935 + $0x40] sm:$0xff]
        %v945 = vld [vmem:[%s935 + $0x48] sm:$0xff]
        %v946 = vld [vmem:[%s935 + $0x50] sm:$0xff]
        %v947 = vld [vmem:[%s935 + $0x58] sm:$0xff]
        %v948 = vld [vmem:[%s935 + $0x60] sm:$0xff]
        %v949 = vld [vmem:[%s935 + $0x68] sm:$0xff]
        %v950 = vld [vmem:[%s935 + $0x70] sm:$0xff]
        %v951 = vld [vmem:[%s935 + $0x78] sm:$0xff]
        %vm952 = vcmask 1045504
        %v953 = vrot.slane %v731, 2
        %v954 = vrot.slane %v732, 2
        %v955 = vsel %vm952, %v953, %v954
        %v956 = vsel %vm772, %v955, 0
        %v958 = vsel %vm772, %v954, 0
        %960 = vmatprep.subr.mxu0 %v937
        %961 = vmatpush1.msra.mxu0 %v936
        %962 = vmatprep.subr.mxu0 %v939
        %963 = vmatpush1.msra.mxu0 %v938
        %964 = vmatprep.subr.mxu0 %v941
        %965 = vmatpush1.msra.mxu0 %v940
        %966 = vmatprep.subr.mxu0 %v943
        %967 = vmatpush1.msra.mxu0 %v942
        %968 = vmatprep.subr.mxu0 %v945
        %969 = vmatpush1.msra.mxu0 %v944
        %970 = vmatprep.subr.mxu0 %v947
        %971 = vmatpush1.msra.mxu0 %v946
        %972 = vmatprep.subr.mxu0 %v949
        %973 = vmatpush1.msra.mxu0 %v948
        %974 = vmatprep.subr.mxu0 %v951
        %975 = vmatpush1.msra.mxu0 %v950
        %976 = vmatprep.subr.mxu0 0.0
        %977 = vmatpush1.msra.mxu0 0.0
        %978 = vmatprep.subr.mxu0 0.0
        %979 = vmatpush1.msra.mxu0 0.0
        %980 = vmatprep.subr.mxu0 0.0
        %981 = vmatpush1.msra.mxu0 0.0
        %982 = vmatprep.subr.mxu0 0.0
        %983 = vmatpush1.msra.mxu0 0.0
        %984 = vmatprep.subr.mxu0 0.0
        %985 = vmatpush1.msra.mxu0 0.0
        %986 = vmatprep.subr.mxu0 0.0
        %987 = vmatpush1.msra.mxu0 0.0
        %988 = vmatprep.subr.mxu0 0.0
        %989 = vmatpush1.msra.mxu0 0.0
        %990 = vmatprep.subr.mxu0 0.0
        %991 = vmatpush1.msra.mxu0 0.0
        %992 = vmatprep.subr.mxu0 0.0
        %993 = vmatpush1.msra.mxu0 0.0
        %994 = vmatprep.subr.mxu0 0.0
        %995 = vmatpush1.msra.mxu0 0.0
        %996 = vmatprep.subr.mxu0 0.0
        %997 = vmatpush1.msra.mxu0 0.0
        %998 = vmatprep.subr.mxu0 0.0
        %999 = vmatpush1.msra.mxu0 0.0
        %1000 = vmatprep.subr.mxu0 0.0
        %1001 = vmatpush1.msra.mxu0 0.0
        %1002 = vmatprep.subr.mxu0 0.0
        %1003 = vmatpush1.msra.mxu0 0.0
        %1004 = vmatprep.subr.mxu0 0.0
        %1005 = vmatpush1.msra.mxu0 0.0
        %1006 = vmatprep.subr.mxu0 0.0
        %1007 = vmatpush1.msra.mxu0 0.0
        %1008 = vmatprep.subr.mxu0 0.0
        %1009 = vmatpush1.msra.mxu0 0.0
        %1010 = vmatprep.subr.mxu0 0.0
        %1011 = vmatpush1.msra.mxu0 0.0
        %1012 = vmatprep.subr.mxu0 0.0
        %1013 = vmatpush1.msra.mxu0 0.0
        %1014 = vmatprep.subr.mxu0 0.0
        %1015 = vmatpush1.msra.mxu0 0.0
        %1016 = vmatprep.subr.mxu0 0.0
        %1017 = vmatpush1.msra.mxu0 0.0
        %1018 = vmatprep.subr.mxu0 0.0
        %1019 = vmatpush1.msra.mxu0 0.0
        %1020 = vmatprep.subr.mxu0 0.0
        %1021 = vmatpush1.msra.mxu0 0.0
        %1022 = vmatprep.subr.mxu0 0.0
        %1023 = vmatpush1.msra.mxu0 0.0
        %1024 = vmatprep.mubr.f32.mxu0 0.0
        %1025 = vmatmul.mubr.f32.gmra.mrb[0].mxu0 %v956
        %v1026 = vpop.f32.mrb[0].mxu0
        %v1027 = vadd.f32 0.0, %v1026
        %v1028 = vpop.f32.mrb[0].mxu0
        %v1029 = vadd.f32 0.0, %v1028
        %1030 = vmatprep.mubr.f32.mxu0 0.0
        %1031 = vmatmul.mubr.f32.gmra.mrb[0].mxu0 %v958
        %v1032 = vpop.f32.mrb[0].mxu0
        %v1033 = vadd.f32 0.0, %v1032
        %v1034 = vpop.f32.mrb[0].mxu0
        %v1035 = vadd.f32 0.0, %v1034
        %1036 = vdwg.mxu0
        %v1037 = vadd.f32 %v925, %v1027
        %v1038 = vadd.f32 %v927, %v1029
        %v1039 = vadd.f32 %v931, %v1033
        %v1040 = vadd.f32 %v933, %v1035
        %v1041 = vld [vmem:[%s5] sm:$0x3]
        %v1043 = vlaneseq
        %v1044 = vshrl.u32 %v1043, 7
        %v1045 = vsub.s32 0, %v1044
        %v1046 = vrot.slane %v1041, %v1045
        %v1047 = vlaneseq
        %v1048 = vshrl.u32 %v1047, 7
        %v1049 = vsub.s32 1, %v1048
        %v1050 = vrot.slane %v1041, %v1049
        %v1053 = vadd.f32 %v1037, %v1046
        %v1054 = vadd.f32 %v1038, %v1050
        %v1055 = vadd.f32 %v1039, %v1046
        %v1056 = vadd.f32 %v1040, %v1050
        %v1057 = vld [vmem:[%s6] sm:$0x3]
        %v1058 = vld [vmem:[%s7] sm:$0x3]
        %v1059 = vadd.f32 %v1053, %v1054
        %1060 = vadd.xlane.f32.xlu0 %v1059
        %v1061 = vpop.xlane.xlu0 %1060
        %v1062 = vsel %vm730, %v1055, 0.0
        %v1063 = vsel %vm730, %v1056, 0.0
        %v1064 = vadd.f32 %v1062, %v1063
        %1065 = vadd.xlane.f32.xlu0 %v1064
        %v1066 = vpop.xlane.xlu0 %1065
        %v1067 = vrcp.pop 256.0
        %v1068 = vmul.f32 %v1061, %v1067
        %v1069 = vmul.f32 %v1066, %v1067
        %v1070 = vsub.f32 %v1053, %v1068
        %v1071 = vsub.f32 %v1054, %v1068
        %v1072 = vsub.f32 %v1055, %v1069
        %v1073 = vsub.f32 %v1056, %v1069
        %v1074 = vmul.f32 %v1070, %v1070
        %v1075 = vmul.f32 %v1071, %v1071
        %v1076 = vmul.f32 %v1072, %v1072
        %v1077 = vmul.f32 %v1073, %v1073
        %v1078 = vadd.f32 %v1074, %v1075
        %1079 = vadd.xlane.f32.xlu0 %v1078
        %v1080 = vpop.xlane.xlu0 %1079
        %v1081 = vsel %vm730, %v1076, 0.0
        %v1082 = vsel %vm730, %v1077, 0.0
        %v1083 = vadd.f32 %v1081, %v1082
        %1084 = vadd.xlane.f32.xlu0 %v1083
        %v1085 = vpop.xlane.xlu0 %1084
        %v1086 = vmul.f32 %v1080, %v1067
        %v1087 = vmul.f32 %v1085, %v1067
        %v1088 = vadd.f32 %v1086, 1e-05
        %v1089 = vadd.f32 %v1087, 1e-05
        %v1090 = vrsqrt.pop %v1088
        %v1091 = vrsqrt.pop %v1089
        %v1092 = vmul.f32 %v1070, %v1090
        %v1093 = vmul.f32 %v1071, %v1090
        %v1094 = vmul.f32 %v1072, %v1091
        %v1095 = vmul.f32 %v1073, %v1091
        %v1097 = vlaneseq
        %v1098 = vshrl.u32 %v1097, 7
        %v1099 = vsub.s32 0, %v1098
        %v1100 = vrot.slane %v1057, %v1099
        %v1101 = vlaneseq
        %v1102 = vshrl.u32 %v1101, 7
        %v1103 = vsub.s32 1, %v1102
        %v1104 = vrot.slane %v1057, %v1103
        %v1107 = vmul.f32 %v1092, %v1100
        %v1108 = vmul.f32 %v1093, %v1104
        %v1109 = vmul.f32 %v1094, %v1100
        %v1110 = vmul.f32 %v1095, %v1104
        %v1112 = vlaneseq
        %v1113 = vshrl.u32 %v1112, 7
        %v1114 = vsub.s32 0, %v1113
        %v1115 = vrot.slane %v1058, %v1114
        %v1116 = vlaneseq
        %v1117 = vshrl.u32 %v1116, 7
        %v1118 = vsub.s32 1, %v1117
        %v1119 = vrot.slane %v1058, %v1118
        %v1122 = vadd.f32 %v1107, %v1115
        %v1123 = vadd.f32 %v1108, %v1119
        %v1124 = vadd.f32 %v1109, %v1115
        %v1125 = vadd.f32 %v1110, %v1119
        %v1126 = vmax.f32 %v1122, 0.0
        %v1127 = vmax.f32 %v1123, 0.0
        %v1128 = vmax.f32 %v1124, 0.0
        %v1129 = vmax.f32 %v1125, 0.0
        %s1130 = smul.u32 %s47, 8
        %s1131 = ssub.s32 %s1130, 1
        %v1132 = vlaneseq
        %v1133 = vshrl.u32 %v1132, 7
        %v1134 = vadd.s32 %v1133, 8
        %v1135 = vstv %s1131
        %v1136 = vadd.s32 %v1135, %v1133
        %v1137 = vadd.s32 %v1135, %v1134
        %vm1138 = vcmp.ge.s32.totalorder %v1136, 0
        %vm1139 = vcmp.ge.s32.totalorder %v1137, 0
        %vm1140 = vcmp.lt.s32.totalorder %v1136, 13
        %vm1141 = vcmp.lt.s32.totalorder %v1137, 13
        %vm1142 = vmand %vm1138, %vm1140
        %vm1143 = vmand %vm1139, %vm1141
        %v1144 = vsel %vm1142, 1, 0
        %v1145 = vsel %vm1143, 1, 0
        %vm1146 = vcmp.eq.s32.totalorder %v1144, 1
        %vm1147 = vcmp.eq.s32.totalorder %v1145, 1
        %v1148 = vsel %vm1146, %v1126, 0.0
        %v1149 = vsel %vm1146, %v1127, 0.0
        %v1150 = vsel %vm1147, %v1128, 0.0
        %v1151 = vsel %vm1147, %v1129, 0.0
        %v1152 = vld [vmem:[#allocation10] sm:$0xff]
        %v1153 = vld [vmem:[#allocation10 + $0x8] sm:$0xff]
        %v1154 = vld [vmem:[#allocation10 + $0x10] sm:$0xff]
        %v1155 = vld [vmem:[#allocation10 + $0x18] sm:$0xff]
        %v1156 = vld [vmem:[#allocation10 + $0x20] sm:$0xff]
        %v1157 = vld [vmem:[#allocation10 + $0x28] sm:$0xff]
        %v1158 = vld [vmem:[#allocation10 + $0x30] sm:$0xff]
        %v1159 = vld [vmem:[#allocation10 + $0x38] sm:$0xff]
        %v1160 = vld [vmem:[#allocation10 + $0x40] sm:$0xff]
        %v1161 = vld [vmem:[#allocation10 + $0x48] sm:$0xff]
        %v1162 = vld [vmem:[#allocation10 + $0x50] sm:$0xff]
        %v1163 = vld [vmem:[#allocation10 + $0x58] sm:$0xff]
        %v1164 = vld [vmem:[#allocation10 + $0x60] sm:$0xff]
        %v1165 = vld [vmem:[#allocation10 + $0x68] sm:$0xff]
        %v1166 = vld [vmem:[#allocation10 + $0x70] sm:$0xff]
        %v1167 = vld [vmem:[#allocation10 + $0x78] sm:$0xff]
        %v1168 = vld [vmem:[#allocation10 + $0x80] sm:$0xff]
        %v1169 = vld [vmem:[#allocation10 + $0x88] sm:$0xff]
        %v1170 = vld [vmem:[#allocation10 + $0x90] sm:$0xff]
        %v1171 = vld [vmem:[#allocation10 + $0x98] sm:$0xff]
        %v1172 = vld [vmem:[#allocation10 + $0xa0] sm:$0xff]
        %v1173 = vld [vmem:[#allocation10 + $0xa8] sm:$0xff]
        %v1174 = vld [vmem:[#allocation10 + $0xb0] sm:$0xff]
        %v1175 = vld [vmem:[#allocation10 + $0xb8] sm:$0xff]
        %v1176 = vld [vmem:[#allocation10 + $0xc0] sm:$0xff]
        %v1177 = vld [vmem:[#allocation10 + $0xc8] sm:$0xff]
        %v1178 = vld [vmem:[#allocation10 + $0xd0] sm:$0xff]
        %v1179 = vld [vmem:[#allocation10 + $0xd8] sm:$0xff]
        %v1180 = vld [vmem:[#allocation10 + $0xe0] sm:$0xff]
        %v1181 = vld [vmem:[#allocation10 + $0xe8] sm:$0xff]
        %v1182 = vld [vmem:[#allocation10 + $0xf0] sm:$0xff]
        %v1183 = vld [vmem:[#allocation10 + $0xf8] sm:$0xff]
        %v1184 = vld [vmem:[#allocation10 + $0x100] sm:$0xff]
        %v1185 = vld [vmem:[#allocation10 + $0x108] sm:$0xff]
        %v1186 = vld [vmem:[#allocation10 + $0x110] sm:$0xff]
        %v1187 = vld [vmem:[#allocation10 + $0x118] sm:$0xff]
        %v1188 = vld [vmem:[#allocation10 + $0x120] sm:$0xff]
        %v1189 = vld [vmem:[#allocation10 + $0x128] sm:$0xff]
        %v1190 = vld [vmem:[#allocation10 + $0x130] sm:$0xff]
        %v1191 = vld [vmem:[#allocation10 + $0x138] sm:$0xff]
        %v1192 = vld [vmem:[#allocation10 + $0x140] sm:$0xff]
        %v1193 = vld [vmem:[#allocation10 + $0x148] sm:$0xff]
        %v1194 = vld [vmem:[#allocation10 + $0x150] sm:$0xff]
        %v1195 = vld [vmem:[#allocation10 + $0x158] sm:$0xff]
        %v1196 = vld [vmem:[#allocation10 + $0x160] sm:$0xff]
        %v1197 = vld [vmem:[#allocation10 + $0x168] sm:$0xff]
        %v1198 = vld [vmem:[#allocation10 + $0x170] sm:$0xff]
        %v1199 = vld [vmem:[#allocation10 + $0x178] sm:$0xff]
        %v1200 = vld [vmem:[#allocation10 + $0x180] sm:$0xff]
        %v1201 = vld [vmem:[#allocation10 + $0x188] sm:$0xff]
        %v1202 = vld [vmem:[#allocation10 + $0x190] sm:$0xff]
        %v1203 = vld [vmem:[#allocation10 + $0x198] sm:$0xff]
        %v1204 = vld [vmem:[#allocation10 + $0x1a0] sm:$0xff]
        %v1205 = vld [vmem:[#allocation10 + $0x1a8] sm:$0xff]
        %v1206 = vld [vmem:[#allocation10 + $0x1b0] sm:$0xff]
        %v1207 = vld [vmem:[#allocation10 + $0x1b8] sm:$0xff]
        %v1208 = vld [vmem:[#allocation10 + $0x1c0] sm:$0xff]
        %v1209 = vld [vmem:[#allocation10 + $0x1c8] sm:$0xff]
        %v1210 = vld [vmem:[#allocation10 + $0x1d0] sm:$0xff]
        %v1211 = vld [vmem:[#allocation10 + $0x1d8] sm:$0xff]
        %v1212 = vld [vmem:[#allocation10 + $0x1e0] sm:$0xff]
        %v1213 = vld [vmem:[#allocation10 + $0x1e8] sm:$0xff]
        %v1214 = vld [vmem:[#allocation10 + $0x1f0] sm:$0xff]
        %v1215 = vld [vmem:[#allocation10 + $0x1f8] sm:$0xff]
        %s1216 = scalar_lea.vmem [#allocation10], 512
        %v1217 = vld [vmem:[%s1216] sm:$0xff]
        %v1218 = vld [vmem:[%s1216 + $0x8] sm:$0xff]
        %v1219 = vld [vmem:[%s1216 + $0x10] sm:$0xff]
        %v1220 = vld [vmem:[%s1216 + $0x18] sm:$0xff]
        %v1221 = vld [vmem:[%s1216 + $0x20] sm:$0xff]
        %v1222 = vld [vmem:[%s1216 + $0x28] sm:$0xff]
        %v1223 = vld [vmem:[%s1216 + $0x30] sm:$0xff]
        %v1224 = vld [vmem:[%s1216 + $0x38] sm:$0xff]
        %v1225 = vld [vmem:[%s1216 + $0x40] sm:$0xff]
        %v1226 = vld [vmem:[%s1216 + $0x48] sm:$0xff]
        %v1227 = vld [vmem:[%s1216 + $0x50] sm:$0xff]
        %v1228 = vld [vmem:[%s1216 + $0x58] sm:$0xff]
        %v1229 = vld [vmem:[%s1216 + $0x60] sm:$0xff]
        %v1230 = vld [vmem:[%s1216 + $0x68] sm:$0xff]
        %v1231 = vld [vmem:[%s1216 + $0x70] sm:$0xff]
        %v1232 = vld [vmem:[%s1216 + $0x78] sm:$0xff]
        %v1233 = vld [vmem:[%s1216 + $0x80] sm:$0xff]
        %v1234 = vld [vmem:[%s1216 + $0x88] sm:$0xff]
        %v1235 = vld [vmem:[%s1216 + $0x90] sm:$0xff]
        %v1236 = vld [vmem:[%s1216 + $0x98] sm:$0xff]
        %v1237 = vld [vmem:[%s1216 + $0xa0] sm:$0xff]
        %v1238 = vld [vmem:[%s1216 + $0xa8] sm:$0xff]
        %v1239 = vld [vmem:[%s1216 + $0xb0] sm:$0xff]
        %v1240 = vld [vmem:[%s1216 + $0xb8] sm:$0xff]
        %v1241 = vld [vmem:[%s1216 + $0xc0] sm:$0xff]
        %v1242 = vld [vmem:[%s1216 + $0xc8] sm:$0xff]
        %v1243 = vld [vmem:[%s1216 + $0xd0] sm:$0xff]
        %v1244 = vld [vmem:[%s1216 + $0xd8] sm:$0xff]
        %v1245 = vld [vmem:[%s1216 + $0xe0] sm:$0xff]
        %v1246 = vld [vmem:[%s1216 + $0xe8] sm:$0xff]
        %v1247 = vld [vmem:[%s1216 + $0xf0] sm:$0xff]
        %v1248 = vld [vmem:[%s1216 + $0xf8] sm:$0xff]
        %v1249 = vld [vmem:[%s1216 + $0x100] sm:$0xff]
        %v1250 = vld [vmem:[%s1216 + $0x108] sm:$0xff]
        %v1251 = vld [vmem:[%s1216 + $0x110] sm:$0xff]
        %v1252 = vld [vmem:[%s1216 + $0x118] sm:$0xff]
        %v1253 = vld [vmem:[%s1216 + $0x120] sm:$0xff]
        %v1254 = vld [vmem:[%s1216 + $0x128] sm:$0xff]
        %v1255 = vld [vmem:[%s1216 + $0x130] sm:$0xff]
        %v1256 = vld [vmem:[%s1216 + $0x138] sm:$0xff]
        %v1257 = vld [vmem:[%s1216 + $0x140] sm:$0xff]
        %v1258 = vld [vmem:[%s1216 + $0x148] sm:$0xff]
        %v1259 = vld [vmem:[%s1216 + $0x150] sm:$0xff]
        %v1260 = vld [vmem:[%s1216 + $0x158] sm:$0xff]
        %v1261 = vld [vmem:[%s1216 + $0x160] sm:$0xff]
        %v1262 = vld [vmem:[%s1216 + $0x168] sm:$0xff]
        %v1263 = vld [vmem:[%s1216 + $0x170] sm:$0xff]
        %v1264 = vld [vmem:[%s1216 + $0x178] sm:$0xff]
        %v1265 = vld [vmem:[%s1216 + $0x180] sm:$0xff]
        %v1266 = vld [vmem:[%s1216 + $0x188] sm:$0xff]
        %v1267 = vld [vmem:[%s1216 + $0x190] sm:$0xff]
        %v1268 = vld [vmem:[%s1216 + $0x198] sm:$0xff]
        %v1269 = vld [vmem:[%s1216 + $0x1a0] sm:$0xff]
        %v1270 = vld [vmem:[%s1216 + $0x1a8] sm:$0xff]
        %v1271 = vld [vmem:[%s1216 + $0x1b0] sm:$0xff]
        %v1272 = vld [vmem:[%s1216 + $0x1b8] sm:$0xff]
        %v1273 = vld [vmem:[%s1216 + $0x1c0] sm:$0xff]
        %v1274 = vld [vmem:[%s1216 + $0x1c8] sm:$0xff]
        %v1275 = vld [vmem:[%s1216 + $0x1d0] sm:$0xff]
        %v1276 = vld [vmem:[%s1216 + $0x1d8] sm:$0xff]
        %v1277 = vld [vmem:[%s1216 + $0x1e0] sm:$0xff]
        %v1278 = vld [vmem:[%s1216 + $0x1e8] sm:$0xff]
        %v1279 = vld [vmem:[%s1216 + $0x1f0] sm:$0xff]
        %v1280 = vld [vmem:[%s1216 + $0x1f8] sm:$0xff]
        %v1285 = vrot.slane %v1148, 1
        %v1286 = vrot.slane %v1150, 1
        %v1287 = vsel %vm768, %v1285, %v1286
        %v1288 = vrot.slane %v1149, 1
        %v1289 = vrot.slane %v1151, 1
        %v1290 = vsel %vm768, %v1288, %v1289
        %1293 = vmatprep.subr.mxu0 %v1218
        %1294 = vmatpush1.msra.mxu0 %v1217
        %1295 = vmatprep.subr.mxu0 %v1220
        %1296 = vmatpush1.msra.mxu0 %v1219
        %1297 = vmatprep.subr.mxu0 %v1222
        %1298 = vmatpush1.msra.mxu0 %v1221
        %1299 = vmatprep.subr.mxu0 %v1224
        %1300 = vmatpush1.msra.mxu0 %v1223
        %1301 = vmatprep.subr.mxu0 %v1226
        %1302 = vmatpush1.msra.mxu0 %v1225
        %1303 = vmatprep.subr.mxu0 %v1228
        %1304 = vmatpush1.msra.mxu0 %v1227
        %1305 = vmatprep.subr.mxu0 %v1230
        %1306 = vmatpush1.msra.mxu0 %v1229
        %1307 = vmatprep.subr.mxu0 %v1232
        %1308 = vmatpush1.msra.mxu0 %v1231
        %1309 = vmatprep.subr.mxu0 %v1234
        %1310 = vmatpush1.msra.mxu0 %v1233
        %1311 = vmatprep.subr.mxu0 %v1236
        %1312 = vmatpush1.msra.mxu0 %v1235
        %1313 = vmatprep.subr.mxu0 %v1238
        %1314 = vmatpush1.msra.mxu0 %v1237
        %1315 = vmatprep.subr.mxu0 %v1240
        %1316 = vmatpush1.msra.mxu0 %v1239
        %1317 = vmatprep.subr.mxu0 %v1242
        %1318 = vmatpush1.msra.mxu0 %v1241
        %1319 = vmatprep.subr.mxu0 %v1244
        %1320 = vmatpush1.msra.mxu0 %v1243
        %1321 = vmatprep.subr.mxu0 %v1246
        %1322 = vmatpush1.msra.mxu0 %v1245
        %1323 = vmatprep.subr.mxu0 %v1248
        %1324 = vmatpush1.msra.mxu0 %v1247
        %1325 = vmatprep.subr.mxu0 %v1250
        %1326 = vmatpush1.msra.mxu0 %v1249
        %1327 = vmatprep.subr.mxu0 %v1252
        %1328 = vmatpush1.msra.mxu0 %v1251
        %1329 = vmatprep.subr.mxu0 %v1254
        %1330 = vmatpush1.msra.mxu0 %v1253
        %1331 = vmatprep.subr.mxu0 %v1256
        %1332 = vmatpush1.msra.mxu0 %v1255
        %1333 = vmatprep.subr.mxu0 %v1258
        %1334 = vmatpush1.msra.mxu0 %v1257
        %1335 = vmatprep.subr.mxu0 %v1260
        %1336 = vmatpush1.msra.mxu0 %v1259
        %1337 = vmatprep.subr.mxu0 %v1262
        %1338 = vmatpush1.msra.mxu0 %v1261
        %1339 = vmatprep.subr.mxu0 %v1264
        %1340 = vmatpush1.msra.mxu0 %v1263
        %1341 = vmatprep.subr.mxu0 %v1266
        %1342 = vmatpush1.msra.mxu0 %v1265
        %1343 = vmatprep.subr.mxu0 %v1268
        %1344 = vmatpush1.msra.mxu0 %v1267
        %1345 = vmatprep.subr.mxu0 %v1270
        %1346 = vmatpush1.msra.mxu0 %v1269
        %1347 = vmatprep.subr.mxu0 %v1272
        %1348 = vmatpush1.msra.mxu0 %v1271
        %1349 = vmatprep.subr.mxu0 %v1274
        %1350 = vmatpush1.msra.mxu0 %v1273
        %1351 = vmatprep.subr.mxu0 %v1276
        %1352 = vmatpush1.msra.mxu0 %v1275
        %1353 = vmatprep.subr.mxu0 %v1278
        %1354 = vmatpush1.msra.mxu0 %v1277
        %1355 = vmatprep.subr.mxu0 %v1280
        %1356 = vmatpush1.msra.mxu0 %v1279
        %1357 = vmatprep.mubr.f32.mxu0 %v1290
        %1358 = vmatmul.mubr.f32.gmra.mrb[0].mxu0 %v1287
        %v1359 = vpop.f32.mrb[0].mxu0
        %v1360 = vadd.f32 0.0, %v1359
        %v1361 = vpop.f32.mrb[0].mxu0
        %v1362 = vadd.f32 0.0, %v1361
        %1363 = vdwg.mxu0
        %1364 = vmatprep.subr.mxu0 %v1153
        %1365 = vmatpush1.msra.mxu0 %v1152
        %1366 = vmatprep.subr.mxu0 %v1155
        %1367 = vmatpush1.msra.mxu0 %v1154
        %1368 = vmatprep.subr.mxu0 %v1157
        %1369 = vmatpush1.msra.mxu0 %v1156
        %1370 = vmatprep.subr.mxu0 %v1159
        %1371 = vmatpush1.msra.mxu0 %v1158
        %1372 = vmatprep.subr.mxu0 %v1161
        %1373 = vmatpush1.msra.mxu0 %v1160
        %1374 = vmatprep.subr.mxu0 %v1163
        %1375 = vmatpush1.msra.mxu0 %v1162
        %1376 = vmatprep.subr.mxu0 %v1165
        %1377 = vmatpush1.msra.mxu0 %v1164
        %1378 = vmatprep.subr.mxu0 %v1167
        %1379 = vmatpush1.msra.mxu0 %v1166
        %1380 = vmatprep.subr.mxu0 %v1169
        %1381 = vmatpush1.msra.mxu0 %v1168
        %1382 = vmatprep.subr.mxu0 %v1171
        %1383 = vmatpush1.msra.mxu0 %v1170
        %1384 = vmatprep.subr.mxu0 %v1173
        %1385 = vmatpush1.msra.mxu0 %v1172
        %1386 = vmatprep.subr.mxu0 %v1175
        %1387 = vmatpush1.msra.mxu0 %v1174
        %1388 = vmatprep.subr.mxu0 %v1177
        %1389 = vmatpush1.msra.mxu0 %v1176
        %1390 = vmatprep.subr.mxu0 %v1179
        %1391 = vmatpush1.msra.mxu0 %v1178
        %1392 = vmatprep.subr.mxu0 %v1181
        %1393 = vmatpush1.msra.mxu0 %v1180
        %1394 = vmatprep.subr.mxu0 %v1183
        %1395 = vmatpush1.msra.mxu0 %v1182
        %1396 = vmatprep.subr.mxu0 %v1185
        %1397 = vmatpush1.msra.mxu0 %v1184
        %1398 = vmatprep.subr.mxu0 %v1187
        %1399 = vmatpush1.msra.mxu0 %v1186
        %1400 = vmatprep.subr.mxu0 %v1189
        %1401 = vmatpush1.msra.mxu0 %v1188
        %1402 = vmatprep.subr.mxu0 %v1191
        %1403 = vmatpush1.msra.mxu0 %v1190
        %1404 = vmatprep.subr.mxu0 %v1193
        %1405 = vmatpush1.msra.mxu0 %v1192
        %1406 = vmatprep.subr.mxu0 %v1195
        %1407 = vmatpush1.msra.mxu0 %v1194
        %1408 = vmatprep.subr.mxu0 %v1197
        %1409 = vmatpush1.msra.mxu0 %v1196
        %1410 = vmatprep.subr.mxu0 %v1199
        %1411 = vmatpush1.msra.mxu0 %v1198
        %1412 = vmatprep.subr.mxu0 %v1201
        %1413 = vmatpush1.msra.mxu0 %v1200
        %1414 = vmatprep.subr.mxu0 %v1203
        %1415 = vmatpush1.msra.mxu0 %v1202
        %1416 = vmatprep.subr.mxu0 %v1205
        %1417 = vmatpush1.msra.mxu0 %v1204
        %1418 = vmatprep.subr.mxu0 %v1207
        %1419 = vmatpush1.msra.mxu0 %v1206
        %1420 = vmatprep.subr.mxu0 %v1209
        %1421 = vmatpush1.msra.mxu0 %v1208
        %1422 = vmatprep.subr.mxu0 %v1211
        %1423 = vmatpush1.msra.mxu0 %v1210
        %1424 = vmatprep.subr.mxu0 %v1213
        %1425 = vmatpush1.msra.mxu0 %v1212
        %1426 = vmatprep.subr.mxu0 %v1215
        %1427 = vmatpush1.msra.mxu0 %v1214
        %1428 = vmatprep.mubr.f32.mxu0 %v1149
        %1429 = vmatmul.mubr.f32.gmra.mrb[0].mxu0 %v1148
        %v1430 = vpop.f32.mrb[0].mxu0
        %v1431 = vadd.f32 %v1360, %v1430
        %v1432 = vpop.f32.mrb[0].mxu0
        %v1433 = vadd.f32 %v1362, %v1432
        %1434 = vdwg.mxu0
        %s1435 = scalar_lea.vmem [#allocation10], 1024
        %v1436 = vld [vmem:[%s1435] sm:$0xff]
        %v1437 = vld [vmem:[%s1435 + $0x8] sm:$0xff]
        %v1438 = vld [vmem:[%s1435 + $0x10] sm:$0xff]
        %v1439 = vld [vmem:[%s1435 + $0x18] sm:$0xff]
        %v1440 = vld [vmem:[%s1435 + $0x20] sm:$0xff]
        %v1441 = vld [vmem:[%s1435 + $0x28] sm:$0xff]
        %v1442 = vld [vmem:[%s1435 + $0x30] sm:$0xff]
        %v1443 = vld [vmem:[%s1435 + $0x38] sm:$0xff]
        %v1444 = vld [vmem:[%s1435 + $0x40] sm:$0xff]
        %v1445 = vld [vmem:[%s1435 + $0x48] sm:$0xff]
        %v1446 = vld [vmem:[%s1435 + $0x50] sm:$0xff]
        %v1447 = vld [vmem:[%s1435 + $0x58] sm:$0xff]
        %v1448 = vld [vmem:[%s1435 + $0x60] sm:$0xff]
        %v1449 = vld [vmem:[%s1435 + $0x68] sm:$0xff]
        %v1450 = vld [vmem:[%s1435 + $0x70] sm:$0xff]
        %v1451 = vld [vmem:[%s1435 + $0x78] sm:$0xff]
        %v1452 = vld [vmem:[%s1435 + $0x80] sm:$0xff]
        %v1453 = vld [vmem:[%s1435 + $0x88] sm:$0xff]
        %v1454 = vld [vmem:[%s1435 + $0x90] sm:$0xff]
        %v1455 = vld [vmem:[%s1435 + $0x98] sm:$0xff]
        %v1456 = vld [vmem:[%s1435 + $0xa0] sm:$0xff]
        %v1457 = vld [vmem:[%s1435 + $0xa8] sm:$0xff]
        %v1458 = vld [vmem:[%s1435 + $0xb0] sm:$0xff]
        %v1459 = vld [vmem:[%s1435 + $0xb8] sm:$0xff]
        %v1460 = vld [vmem:[%s1435 + $0xc0] sm:$0xff]
        %v1461 = vld [vmem:[%s1435 + $0xc8] sm:$0xff]
        %v1462 = vld [vmem:[%s1435 + $0xd0] sm:$0xff]
        %v1463 = vld [vmem:[%s1435 + $0xd8] sm:$0xff]
        %v1464 = vld [vmem:[%s1435 + $0xe0] sm:$0xff]
        %v1465 = vld [vmem:[%s1435 + $0xe8] sm:$0xff]
        %v1466 = vld [vmem:[%s1435 + $0xf0] sm:$0xff]
        %v1467 = vld [vmem:[%s1435 + $0xf8] sm:$0xff]
        %v1468 = vld [vmem:[%s1435 + $0x100] sm:$0xff]
        %v1469 = vld [vmem:[%s1435 + $0x108] sm:$0xff]
        %v1470 = vld [vmem:[%s1435 + $0x110] sm:$0xff]
        %v1471 = vld [vmem:[%s1435 + $0x118] sm:$0xff]
        %v1472 = vld [vmem:[%s1435 + $0x120] sm:$0xff]
        %v1473 = vld [vmem:[%s1435 + $0x128] sm:$0xff]
        %v1474 = vld [vmem:[%s1435 + $0x130] sm:$0xff]
        %v1475 = vld [vmem:[%s1435 + $0x138] sm:$0xff]
        %v1476 = vld [vmem:[%s1435 + $0x140] sm:$0xff]
        %v1477 = vld [vmem:[%s1435 + $0x148] sm:$0xff]
        %v1478 = vld [vmem:[%s1435 + $0x150] sm:$0xff]
        %v1479 = vld [vmem:[%s1435 + $0x158] sm:$0xff]
        %v1480 = vld [vmem:[%s1435 + $0x160] sm:$0xff]
        %v1481 = vld [vmem:[%s1435 + $0x168] sm:$0xff]
        %v1482 = vld [vmem:[%s1435 + $0x170] sm:$0xff]
        %v1483 = vld [vmem:[%s1435 + $0x178] sm:$0xff]
        %v1484 = vld [vmem:[%s1435 + $0x180] sm:$0xff]
        %v1485 = vld [vmem:[%s1435 + $0x188] sm:$0xff]
        %v1486 = vld [vmem:[%s1435 + $0x190] sm:$0xff]
        %v1487 = vld [vmem:[%s1435 + $0x198] sm:$0xff]
        %v1488 = vld [vmem:[%s1435 + $0x1a0] sm:$0xff]
        %v1489 = vld [vmem:[%s1435 + $0x1a8] sm:$0xff]
        %v1490 = vld [vmem:[%s1435 + $0x1b0] sm:$0xff]
        %v1491 = vld [vmem:[%s1435 + $0x1b8] sm:$0xff]
        %v1492 = vld [vmem:[%s1435 + $0x1c0] sm:$0xff]
        %v1493 = vld [vmem:[%s1435 + $0x1c8] sm:$0xff]
        %v1494 = vld [vmem:[%s1435 + $0x1d0] sm:$0xff]
        %v1495 = vld [vmem:[%s1435 + $0x1d8] sm:$0xff]
        %v1496 = vld [vmem:[%s1435 + $0x1e0] sm:$0xff]
        %v1497 = vld [vmem:[%s1435 + $0x1e8] sm:$0xff]
        %v1498 = vld [vmem:[%s1435 + $0x1f0] sm:$0xff]
        %v1499 = vld [vmem:[%s1435 + $0x1f8] sm:$0xff]
        %v1500 = vrot.slane %v1148, 2
        %v1501 = vrot.slane %v1150, 2
        %v1502 = vsel %vm952, %v1500, %v1501
        %v1503 = vrot.slane %v1149, 2
        %v1504 = vrot.slane %v1151, 2
        %v1505 = vsel %vm952, %v1503, %v1504
        %1508 = vmatprep.subr.mxu0 %v1437
        %1509 = vmatpush1.msra.mxu0 %v1436
        %1510 = vmatprep.subr.mxu0 %v1439
        %1511 = vmatpush1.msra.mxu0 %v1438
        %1512 = vmatprep.subr.mxu0 %v1441
        %1513 = vmatpush1.msra.mxu0 %v1440
        %1514 = vmatprep.subr.mxu0 %v1443
        %1515 = vmatpush1.msra.mxu0 %v1442
        %1516 = vmatprep.subr.mxu0 %v1445
        %1517 = vmatpush1.msra.mxu0 %v1444
        %1518 = vmatprep.subr.mxu0 %v1447
        %1519 = vmatpush1.msra.mxu0 %v1446
        %1520 = vmatprep.subr.mxu0 %v1449
        %1521 = vmatpush1.msra.mxu0 %v1448
        %1522 = vmatprep.subr.mxu0 %v1451
        %1523 = vmatpush1.msra.mxu0 %v1450
        %1524 = vmatprep.subr.mxu0 %v1453
        %1525 = vmatpush1.msra.mxu0 %v1452
        %1526 = vmatprep.subr.mxu0 %v1455
        %1527 = vmatpush1.msra.mxu0 %v1454
        %1528 = vmatprep.subr.mxu0 %v1457
        %1529 = vmatpush1.msra.mxu0 %v1456
        %1530 = vmatprep.subr.mxu0 %v1459
        %1531 = vmatpush1.msra.mxu0 %v1458
        %1532 = vmatprep.subr.mxu0 %v1461
        %1533 = vmatpush1.msra.mxu0 %v1460
        %1534 = vmatprep.subr.mxu0 %v1463
        %1535 = vmatpush1.msra.mxu0 %v1462
        %1536 = vmatprep.subr.mxu0 %v1465
        %1537 = vmatpush1.msra.mxu0 %v1464
        %1538 = vmatprep.subr.mxu0 %v1467
        %1539 = vmatpush1.msra.mxu0 %v1466
        %1540 = vmatprep.subr.mxu0 %v1469
        %1541 = vmatpush1.msra.mxu0 %v1468
        %1542 = vmatprep.subr.mxu0 %v1471
        %1543 = vmatpush1.msra.mxu0 %v1470
        %1544 = vmatprep.subr.mxu0 %v1473
        %1545 = vmatpush1.msra.mxu0 %v1472
        %1546 = vmatprep.subr.mxu0 %v1475
        %1547 = vmatpush1.msra.mxu0 %v1474
        %1548 = vmatprep.subr.mxu0 %v1477
        %1549 = vmatpush1.msra.mxu0 %v1476
        %1550 = vmatprep.subr.mxu0 %v1479
        %1551 = vmatpush1.msra.mxu0 %v1478
        %1552 = vmatprep.subr.mxu0 %v1481
        %1553 = vmatpush1.msra.mxu0 %v1480
        %1554 = vmatprep.subr.mxu0 %v1483
        %1555 = vmatpush1.msra.mxu0 %v1482
        %1556 = vmatprep.subr.mxu0 %v1485
        %1557 = vmatpush1.msra.mxu0 %v1484
        %1558 = vmatprep.subr.mxu0 %v1487
        %1559 = vmatpush1.msra.mxu0 %v1486
        %1560 = vmatprep.subr.mxu0 %v1489
        %1561 = vmatpush1.msra.mxu0 %v1488
        %1562 = vmatprep.subr.mxu0 %v1491
        %1563 = vmatpush1.msra.mxu0 %v1490
        %1564 = vmatprep.subr.mxu0 %v1493
        %1565 = vmatpush1.msra.mxu0 %v1492
        %1566 = vmatprep.subr.mxu0 %v1495
        %1567 = vmatpush1.msra.mxu0 %v1494
        %1568 = vmatprep.subr.mxu0 %v1497
        %1569 = vmatpush1.msra.mxu0 %v1496
        %1570 = vmatprep.subr.mxu0 %v1499
        %1571 = vmatpush1.msra.mxu0 %v1498
        %1572 = vmatprep.mubr.f32.mxu0 %v1505
        %1573 = vmatmul.mubr.f32.gmra.mrb[0].mxu0 %v1502
        %v1574 = vpop.f32.mrb[0].mxu0
        %v1575 = vadd.f32 0.0, %v1574
        %v1576 = vpop.f32.mrb[0].mxu0
        %v1577 = vadd.f32 0.0, %v1576
        %1578 = vdwg.mxu0
        %v1579 = vadd.f32 %v1431, %v1575
        %v1580 = vadd.f32 %v1433, %v1577
        %v1581 = vld [vmem:[%s9] sm:$0x3]
        %v1583 = vlaneseq
        %v1584 = vshrl.u32 %v1583, 7
        %v1585 = vsub.s32 0, %v1584
        %v1586 = vrot.slane %v1581, %v1585
        %v1587 = vlaneseq
        %v1588 = vshrl.u32 %v1587, 7
        %v1589 = vsub.s32 1, %v1588
        %v1590 = vrot.slane %v1581, %v1589
        %v1593 = vadd.f32 %v1579, %v1586
        %v1594 = vadd.f32 %v1580, %v1590
        %v1595 = vld [vmem:[%s10] sm:$0x3]
        %v1596 = vld [vmem:[%s11] sm:$0x3]
        %v1597 = vadd.f32 %v1593, %v1594
        %1598 = vadd.xlane.f32.xlu0 %v1597
        %v1599 = vpop.xlane.xlu0 %1598
        %v1600 = vmul.f32 %v1599, %v1067
        %v1601 = vsub.f32 %v1593, %v1600
        %v1602 = vsub.f32 %v1594, %v1600
        %v1603 = vmul.f32 %v1601, %v1601
        %v1604 = vmul.f32 %v1602, %v1602
        %v1605 = vadd.f32 %v1603, %v1604
        %1606 = vadd.xlane.f32.xlu0 %v1605
        %v1607 = vpop.xlane.xlu0 %1606
        %v1608 = vmul.f32 %v1607, %v1067
        %v1609 = vadd.f32 %v1608, 1e-05
        %v1610 = vrsqrt.pop %v1609
        %v1611 = vmul.f32 %v1601, %v1610
        %v1612 = vmul.f32 %v1602, %v1610
        %v1614 = vlaneseq
        %v1615 = vshrl.u32 %v1614, 7
        %v1616 = vsub.s32 0, %v1615
        %v1617 = vrot.slane %v1595, %v1616
        %v1618 = vlaneseq
        %v1619 = vshrl.u32 %v1618, 7
        %v1620 = vsub.s32 1, %v1619
        %v1621 = vrot.slane %v1595, %v1620
        %v1624 = vmul.f32 %v1611, %v1617
        %v1625 = vmul.f32 %v1612, %v1621
        %v1627 = vlaneseq
        %v1628 = vshrl.u32 %v1627, 7
        %v1629 = vsub.s32 0, %v1628
        %v1630 = vrot.slane %v1596, %v1629
        %v1631 = vlaneseq
        %v1632 = vshrl.u32 %v1631, 7
        %v1633 = vsub.s32 1, %v1632
        %v1634 = vrot.slane %v1596, %v1633
        %v1637 = vadd.f32 %v1624, %v1630
        %v1638 = vadd.f32 %v1625, %v1634
        %v1639 = vmax.f32 %v1637, 0.0
        %v1640 = vmax.f32 %v1638, 0.0
        %v1641 = vld [vmem:[%s12] sm:$0x3]
        %v1643 = vlaneseq
        %v1644 = vshrl.u32 %v1643, 7
        %v1645 = vsub.s32 0, %v1644
        %v1646 = vrot.slane %v1641, %v1645
        %v1647 = vlaneseq
        %v1648 = vshrl.u32 %v1647, 7
        %v1649 = vsub.s32 1, %v1648
        %v1650 = vrot.slane %v1641, %v1649
        %v1653 = vmul.f32 %v1639, %v1646
        %v1654 = vmul.f32 %v1640, %v1650
        %v1655 = vadd.f32 %v1653, %v1654
        %1656 = vadd.xlane.f32.xlu0 %v1655
        %v1657 = vpop.xlane.xlu0 %1656
        %v1658 = vld [vmem:[#allocation3] sm:$0x1]
        %v1660 = vlaneseq
        %v1661 = vshrl.u32 %v1660, 7
        %v1662 = vsub.s32 0, %v1661
        %v1663 = vrot.slane %v1658, %v1662
        %v1665 = vadd.f32 %v1657, %v1663
        %v1666 = vmax.f32 %v1665, 0.0
        %s1667 = sld [smem:[#allocation2]]
        %v1668 = vadd.f32 %v1666, 0.5
        %v1669 = vstv %s1667
        %v1670 = vmul.f32 %v1668, %v1669
        %vm1671 = vcmp.ge.f32.partialorder %v1670, 0.0
        %v1672 = vfloor.f32 %v1670
        %v1673 = vceil.f32 %v1670
        %v1674 = vsel %vm1671, %v1672, %v1673
        %v1675 = vcvt.f32.s32.to.zero.pseudo %v1674
        %vm1676 = vcmask 7168
        %1677 = vst.msk [vmem:[%s720] sm:$0xff] %vm1676, %v1675
        %v1678 = vld [vmem:[%s14] sm:$0x3]
        %v1680 = vlaneseq
        %v1681 = vshrl.u32 %v1680, 7
        %v1682 = vsub.s32 0, %v1681
        %v1683 = vrot.slane %v1678, %v1682
        %v1684 = vlaneseq
        %v1685 = vshrl.u32 %v1684, 7
        %v1686 = vsub.s32 1, %v1685
        %v1687 = vrot.slane %v1678, %v1686
        %1691 = vset.pattern.permute.xlu0 0
        %1692 = vperm.xlu0 %1691, %v1674
        %v1693 = vpop.permute.xlu0 %1692
        %vm1695 = vcmp.lt.f32.partialorder %v1683, %v1693
        %vm1696 = vcmp.lt.f32.partialorder %v1687, %v1693
        %v1697 = vsel %vm1695, 1, 0
        %v1698 = vsel %vm1696, 1, 0
        %v1699 = vadd.s32 %v1697, %v1698
        %v1700 = vand.u32 %v1699, 65535
        %v1701 = vshrl.u32 %v1699, 16
        %v1702 = vcvt.s32.f32 %v1700
        %v1703 = vcvt.s32.f32 %v1701
        %1704 = vadd.xlane.f32.xlu0 %v1702
        %v1705 = vpop.xlane.xlu0 %1704
        %1706 = vadd.xlane.f32.xlu0 %v1703
        %v1707 = vpop.xlane.xlu0 %1706
        %v1708 = vcvt.f32.s32 %v1705
        %v1709 = vcvt.f32.s32 %v1707
        %v1710 = vshll.u32 %v1709, 16
        %v1711 = vadd.s32 %v1710, %v1708
        %v1712 = vlaneseq
        %v1713 = vand.u32 %v1712, 127
        %v1714 = vadd.s32 %v1713, 128
        %vm1715 = vcmp.eq.s32.totalorder %v1713, %v1711
        %vm1716 = vcmp.eq.s32.totalorder %v1714, %v1711
        %v1717 = vsel %vm1715, 1, 0
        %v1718 = vsel %vm1716, 1, 0
        %v1719 = vcvt.s32.f32 %v1717
        %v1720 = vcvt.s32.f32 %v1718
        %v1721 = vld [vmem:[#allocation12] sm:$0xff]
        %v1722 = vld [vmem:[#allocation12 + $0x8] sm:$0xff]
        %v1723 = vld [vmem:[#allocation12 + $0x10] sm:$0xff]
        %v1724 = vld [vmem:[#allocation12 + $0x18] sm:$0xff]
        %v1725 = vld [vmem:[#allocation12 + $0x20] sm:$0xff]
        %v1726 = vld [vmem:[#allocation12 + $0x28] sm:$0xff]
        %v1727 = vld [vmem:[#allocation12 + $0x30] sm:$0xff]
        %v1728 = vld [vmem:[#allocation12 + $0x38] sm:$0xff]
        %v1729 = vld [vmem:[#allocation12 + $0x40] sm:$0xff]
        %v1730 = vld [vmem:[#allocation12 + $0x48] sm:$0xff]
        %v1731 = vld [vmem:[#allocation12 + $0x50] sm:$0xff]
        %v1732 = vld [vmem:[#allocation12 + $0x58] sm:$0xff]
        %v1733 = vld [vmem:[#allocation12 + $0x60] sm:$0xff]
        %v1734 = vld [vmem:[#allocation12 + $0x68] sm:$0xff]
        %v1735 = vld [vmem:[#allocation12 + $0x70] sm:$0xff]
        %v1736 = vld [vmem:[#allocation12 + $0x78] sm:$0xff]
        %v1737 = vld [vmem:[#allocation12 + $0x80] sm:$0xff]
        %v1738 = vld [vmem:[#allocation12 + $0x88] sm:$0xff]
        %v1739 = vld [vmem:[#allocation12 + $0x90] sm:$0xff]
        %v1740 = vld [vmem:[#allocation12 + $0x98] sm:$0xff]
        %v1741 = vld [vmem:[#allocation12 + $0xa0] sm:$0xff]
        %v1742 = vld [vmem:[#allocation12 + $0xa8] sm:$0xff]
        %v1743 = vld [vmem:[#allocation12 + $0xb0] sm:$0xff]
        %v1744 = vld [vmem:[#allocation12 + $0xb8] sm:$0xff]
        %v1745 = vld [vmem:[#allocation12 + $0xc0] sm:$0xff]
        %v1746 = vld [vmem:[#allocation12 + $0xc8] sm:$0xff]
        %v1747 = vld [vmem:[#allocation12 + $0xd0] sm:$0xff]
        %v1748 = vld [vmem:[#allocation12 + $0xd8] sm:$0xff]
        %v1749 = vld [vmem:[#allocation12 + $0xe0] sm:$0xff]
        %v1750 = vld [vmem:[#allocation12 + $0xe8] sm:$0xff]
        %v1751 = vld [vmem:[#allocation12 + $0xf0] sm:$0xff]
        %v1752 = vld [vmem:[#allocation12 + $0xf8] sm:$0xff]
        %1753 = vmatprep.subr.mxu0 0.0
        %1754 = vmatpush1.msra.mxu0 %v1721
        %1755 = vmatprep.subr.mxu0 0.0
        %1756 = vmatpush1.msra.mxu0 %v1722
        %1757 = vmatprep.subr.mxu0 0.0
        %1758 = vmatpush1.msra.mxu0 %v1723
        %1759 = vmatprep.subr.mxu0 0.0
        %1760 = vmatpush1.msra.mxu0 %v1724
        %1761 = vmatprep.subr.mxu0 0.0
        %1762 = vmatpush1.msra.mxu0 %v1725
        %1763 = vmatprep.subr.mxu0 0.0
        %1764 = vmatpush1.msra.mxu0 %v1726
        %1765 = vmatprep.subr.mxu0 0.0
        %1766 = vmatpush1.msra.mxu0 %v1727
        %1767 = vmatprep.subr.mxu0 0.0
        %1768 = vmatpush1.msra.mxu0 %v1728
        %1769 = vmatprep.subr.mxu0 0.0
        %1770 = vmatpush1.msra.mxu0 %v1729
        %1771 = vmatprep.subr.mxu0 0.0
        %1772 = vmatpush1.msra.mxu0 %v1730
        %1773 = vmatprep.subr.mxu0 0.0
        %1774 = vmatpush1.msra.mxu0 %v1731
        %1775 = vmatprep.subr.mxu0 0.0
        %1776 = vmatpush1.msra.mxu0 %v1732
        %1777 = vmatprep.subr.mxu0 0.0
        %1778 = vmatpush1.msra.mxu0 %v1733
        %1779 = vmatprep.subr.mxu0 0.0
        %1780 = vmatpush1.msra.mxu0 %v1734
        %1781 = vmatprep.subr.mxu0 0.0
        %1782 = vmatpush1.msra.mxu0 %v1735
        %1783 = vmatprep.subr.mxu0 0.0
        %1784 = vmatpush1.msra.mxu0 %v1736
        %1785 = vmatprep.subr.mxu0 0.0
        %1786 = vmatpush1.msra.mxu0 %v1737
        %1787 = vmatprep.subr.mxu0 0.0
        %1788 = vmatpush1.msra.mxu0 %v1738
        %1789 = vmatprep.subr.mxu0 0.0
        %1790 = vmatpush1.msra.mxu0 %v1739
        %1791 = vmatprep.subr.mxu0 0.0
        %1792 = vmatpush1.msra.mxu0 %v1740
        %1793 = vmatprep.subr.mxu0 0.0
        %1794 = vmatpush1.msra.mxu0 %v1741
        %1795 = vmatprep.subr.mxu0 0.0
        %1796 = vmatpush1.msra.mxu0 %v1742
        %1797 = vmatprep.subr.mxu0 0.0
        %1798 = vmatpush1.msra.mxu0 %v1743
        %1799 = vmatprep.subr.mxu0 0.0
        %1800 = vmatpush1.msra.mxu0 %v1744
        %1801 = vmatprep.subr.mxu0 0.0
        %1802 = vmatpush1.msra.mxu0 %v1745
        %1803 = vmatprep.subr.mxu0 0.0
        %1804 = vmatpush1.msra.mxu0 %v1746
        %1805 = vmatprep.subr.mxu0 0.0
        %1806 = vmatpush1.msra.mxu0 %v1747
        %1807 = vmatprep.subr.mxu0 0.0
        %1808 = vmatpush1.msra.mxu0 %v1748
        %1809 = vmatprep.subr.mxu0 0.0
        %1810 = vmatpush1.msra.mxu0 %v1749
        %1811 = vmatprep.subr.mxu0 0.0
        %1812 = vmatpush1.msra.mxu0 %v1750
        %1813 = vmatprep.subr.mxu0 0.0
        %1814 = vmatpush1.msra.mxu0 %v1751
        %1815 = vmatprep.subr.mxu0 0.0
        %1816 = vmatpush1.msra.mxu0 %v1752
        %1817 = vmatprep.mubr.f32.mxu0 %v1720
        %1818 = vmatmul.mubr.f32.gmra.mrb[0].mxu0 %v1719
        %v1819 = vpop.f32.mrb[0].mxu0
        %v1820 = vadd.f32 0.0, %v1819
        %v1821 = vpop.f32.mrb[0].mxu0
        %1822 = vdwg.mxu0
        %1823 = vst [vmem:[%s694] sm:$0xff] %v1820
        %s1824 = sand.u32 %s421, 1
        %s1825 = scalar_lea.sflag [#allocation6], %s1824
        %s1826 = sand.u32 %s421, 1
        %s1827 = smul.addr %s1826, 8
        %s1828 = scalar_lea.vmem [#allocation13], %s1827
        %p1829 = scmp.lt.s32.totalorder %s46, 1
        %s1830 = scalar_select %p1829, %s46, 1
        %p1831 = scmp.lt.s32.totalorder %s47, 1
        %s1832 = scalar_select %p1831, %s47, 1
        %s1833 = smul.addr %s1830, 2
        %s1834 = sadd.s32 %s1832, %s1833
        %s1835 = smul.addr %s1834, 8
        %s1836 = scalar_lea.vmem %s17, %s1835
        // Predicated region
        $region105: #{tpu_custom_call.1} parent=83 // pred_check
          %p1837 = pneg %p431
        $region106: #{tpu_custom_call.1} parent=83 // pred_check_branch
          %1839 = sbr.rel (%p1837) target = $region108
        $region107: #{tpu_custom_call.1} parent=83 // pred_region
          %s1841 = ssub.s32 128, 128
          %1842 = vsyncadd %s1825, %s1841
          %s1843 = smul.addr %s46, 2
          %s1844 = sadd.s32 %s47, %s1843
          %s1845 = smul.addr %s1844, 128
          %s1846 = scalar_lea.hbm %s16, %s1845
          %s1848 = sshll.u32 %s1828, 4
          %s1849 = int_to_ptr.vmem [resolvable:$true] %s1848
          %1851 = dma.vmem_to_hbm [thread:$0]  %s1849, 128, %s1846, %s1825
        $region108: #{tpu_custom_call.1} parent=83 // pred_fallthru
          _
        // Predicated region
        $region109: #{tpu_custom_call.1} parent=83 // pred_check
          %p1852 = pneg %p459
        $region110: #{tpu_custom_call.1} parent=83 // pred_check_branch
          %1854 = sbr.rel (%p1852) target = $region112
        $region111: #{tpu_custom_call.1} parent=83 // pred_region
          _
        $region112: #{tpu_custom_call.1} parent=83 // pred_fallthru
          _
      $region84: #{tpu_custom_call.1} parent=5 // pred_fallthru
        _
      %p1855 = scmp.le.s32.totalorder 2, %s37
      // Predicated region
      $region113: #{tpu_custom_call.1} parent=5 // pred_check
        %p1856 = pneg %p1855
      $region114: #{tpu_custom_call.1} parent=5 // pred_check_branch
        %1858 = sbr.rel (%p1856) target = $region116
      $region115: #{tpu_custom_call.1} parent=5 // pred_region
        %s1859 = ssub.s32 %s37, 2
        // Predicated region
        $region117: #{tpu_custom_call.1} parent=115 // pred_check
          %p1860 = pneg %p437
        $region118: #{tpu_custom_call.1} parent=115 // pred_check_branch
          %1862 = sbr.rel (%p1860) target = $region120
        $region119: #{tpu_custom_call.1} parent=115 // pred_region
          %s1863 = sand.u32 %s422, 1
          %s1864 = scalar_lea.sflag [#allocation6], %s1863
          %s1865 = sand.u32 %s422, 1
          %s1866 = smul.addr %s1865, 8
          %s1867 = scalar_lea.vmem [#allocation13], %s1866
          %1868 = dma.done %s1864, 128
        $region120: #{tpu_custom_call.1} parent=115 // pred_fallthru
          _
        // Predicated region
        $region121: #{tpu_custom_call.1} parent=115 // pred_check
          %p1869 = pneg %p465
        $region122: #{tpu_custom_call.1} parent=115 // pred_check_branch
          %1871 = sbr.rel (%p1869) target = $region124
        $region123: #{tpu_custom_call.1} parent=115 // pred_region
          %p1872 = scmp.lt.s32.totalorder %s48, 1
          %s1873 = scalar_select %p1872, %s48, 1
          %p1874 = scmp.lt.s32.totalorder %s49, 1
          %s1875 = scalar_select %p1874, %s49, 1
          %s1876 = smul.addr %s1873, 2
          %s1877 = sadd.s32 %s1875, %s1876
          %s1878 = smul.addr %s1877, 8
          %s1879 = scalar_lea.vmem %s17, %s1878
        $region124: #{tpu_custom_call.1} parent=115 // pred_fallthru
          _
      $region116: #{tpu_custom_call.1} parent=5 // pred_fallthru
        _
    $region6: #{tpu_custom_call.1} parent=1 // loop_footer
      %s41 = sadd.s32 1, %s37
    $region7: #{tpu_custom_call.1} parent=1 // loop_footer_branch
      %36 = sbr.rel target = $region3
    $region8: #{tpu_custom_call.1} parent=1 // loop_exit
      _
    %1880 = vsyncpa [#allocation5], 1
    %s1881 = scalar_lea.sflag [#allocation5], 1
    %1882 = vsyncpa %s1881, 1
    %1883 = vsyncpa [#allocation8], 1
    %s1884 = scalar_lea.sflag [#allocation8], 1
    %1885 = vsyncpa %s1884, 1
    %1886 = vsyncpa [#allocation11], 1
    %1887 = vsyncpa [#allocation6], 1
    %s1888 = scalar_lea.sflag [#allocation6], 1
    %1889 = vsyncpa %s1888, 1

</llo_original>
